<compile_context>
chip_gen: v5e
topology: v5e:2x2
jax: 0.10.0
libtpu: 0.0.40
codegen_flags: <defaults>
</compile_context>

<pallas_src>
import math

import jax
import jax.numpy as jnp
import numpy as np
from jax.experimental import pallas as pl
from jax.experimental.pallas import tpu as pltpu  # noqa: F401  (kept for easy CompilerParams tweaks)

# ----------------------------- config (small, synthetic BERT) ------------------------
B = 2            # batch
S = 8            # sequence length
H = 32           # hidden size
NH = 2           # attention heads
HD = H // NH     # head dim
I = 64           # intermediate (FFN) size
NUM_LAYERS = 2
VOCAB = 100
TYPE_VOCAB = 2
NUM_LABELS = 5
LN_EPS = 1e-12

BS = B * S       # rows processed by the kernel
LANE = 128       # lane-dense classifier output width (NUM_LABELS padded up to 128)
OUT_ROWS = 8     # sublane-padded output rows (full (8,128) block -> unmasked store)

# rows of the packed per-layer vector slab [L, 8, 128]
V_BQKV, V_BO, V_G1, V_BE1, V_BI, V_BF, V_G2, V_BE2 = range(8)


# ----------------------------- in-kernel helpers -------------------------------------
def _layernorm(x, gamma, beta, eps=LN_EPS):
    mu = jnp.mean(x, axis=-1, keepdims=True)
    var = jnp.mean((x - mu) ** 2, axis=-1, keepdims=True)
    return (x - mu) * jax.lax.rsqrt(var + eps) * gamma + beta


def _gelu(x):
    # tanh-approx GELU (matches the reference implementation below)
    return 0.5 * x * (1.0 + jnp.tanh(0.7978845608028654 * (x + 0.044715 * x * x * x)))


# ----------------------------- fused BERT encoder + classifier kernel ----------------
def fused_bert_kernel(emb_ref, mb_ref, embln_ref,
                      wqkv_ref, wof_ref, wi_ref, vecs_ref,
                      cw_ref, cb_ref,
                      probs_ref):
    # Embedding LayerNorm fused here (feedback: drop one XLA fusion + one HBM activation trip).
    x = _layernorm(emb_ref[...], embln_ref[0:1, :], embln_ref[1:2, :])    # [BS, H]
    mask_bias = mb_ref[...]                                               # [B, 1, S] additive bias
    inv_sqrt_hd = 1.0 / math.sqrt(HD)

    # Static unrolled layer loop — all per-layer weight slabs already resident in VMEM.
    for l in range(NUM_LAYERS):
        # ---- fused QKV projection: ONE [BS,H] @ [H,3H] MXU contraction ----
        qkv = (jnp.dot(x, wqkv_ref[l], preferred_element_type=jnp.float32)
               + vecs_ref[l, V_BQKV:V_BQKV + 1, 0:3 * H])                 # [BS, 3H]

        # ---- attention: per-head 3-D einsums (single batch dim), heads from static lane slices ----
        ctx_heads = []
        for h in range(NH):
            qh = qkv[:, 0 * H + h * HD: 0 * H + (h + 1) * HD].reshape(B, S, HD)
            kh = qkv[:, 1 * H + h * HD: 1 * H + (h + 1) * HD].reshape(B, S, HD)
            vh = qkv[:, 2 * H + h * HD: 2 * H + (h + 1) * HD].reshape(B, S, HD)

            scores = jnp.einsum("bqd,bkd->bqk", qh, kh,
                                preferred_element_type=jnp.float32) * inv_sqrt_hd
            scores = scores + mask_bias                       # [B,1,S] broadcast over queries
            scores = scores - jnp.max(scores, axis=-1, keepdims=True)
            p = jnp.exp(scores)
            p = p * pl.reciprocal(jnp.sum(p, axis=-1, keepdims=True), approx=False)

            ctx_heads.append(
                jnp.einsum("bqk,bkd->bqd", p, vh,
                           preferred_element_type=jnp.float32).reshape(BS, HD))

        # ---- output projection: ONE [BS,H] @ [H,H] matmul on the concatenated context ----
        ctx = jnp.concatenate(ctx_heads, axis=-1)                          # [BS, H]
        attn = (jnp.dot(ctx, wof_ref[l, 0:H, :], preferred_element_type=jnp.float32)
                + vecs_ref[l, V_BO:V_BO + 1, 0:H])
        x1 = _layernorm(x + attn,
                        vecs_ref[l, V_G1:V_G1 + 1, 0:H],
                        vecs_ref[l, V_BE1:V_BE1 + 1, 0:H])

        # ---- FFN ----
        hid = _gelu(jnp.dot(x1, wi_ref[l], preferred_element_type=jnp.float32)
                    + vecs_ref[l, V_BI:V_BI + 1, 0:I])
        ffn = (jnp.dot(hid, wof_ref[l, H:H + I, :], preferred_element_type=jnp.float32)
               + vecs_ref[l, V_BF:V_BF + 1, 0:H])
        x = _layernorm(x1 + ffn,
                       vecs_ref[l, V_G2:V_G2 + 1, 0:H],
                       vecs_ref[l, V_BE2:V_BE2 + 1, 0:H])

    # ---- classifier head (fused, no extra launch) ----
    # [CLS] rows are rows b*S of x; gather them with static row slices + row concat.
    cls = jnp.concatenate([x[b * S: b * S + 1, :] for b in range(B)], axis=0)   # [B, H]
    # cw is zero-padded to 128 lanes; cb padding is -1e9, so padded logits vanish in the softmax.
    logits = jnp.dot(cls, cw_ref[...], preferred_element_type=jnp.float32) + cb_ref[...]
    logits = logits - jnp.max(logits, axis=-1, keepdims=True)
    e = jnp.exp(logits)
    probs = e * pl.reciprocal(jnp.sum(e, axis=-1, keepdims=True), approx=False)
    # Pad to a full (8,128) block so the single output store is unmasked / lane-dense.
    probs_ref[...] = jnp.concatenate(
        [probs, jnp.zeros((OUT_ROWS - B, LANE), jnp.float32)], axis=0)


def fused_bert_pallas(emb, mask_bias, p):
    # Single invocation, no grid: every (tiny) slab is a whole-array VMEM block.
    # TODO(synk): at real BERT sizes re-introduce a layer-streaming grid axis (arbitrary) with
    # bf16 weight slabs and a parallel row-tile axis (v7x megacore); unnecessary at ~64 KiB.
    return pl.pallas_call(
        fused_bert_kernel,
        out_shape=jax.ShapeDtypeStruct((OUT_ROWS, LANE), jnp.float32),
    )(emb, mask_bias, p["embln"],
      p["wqkv"], p["wof"], p["wi"], p["vecs"],
      p["cw"], p["cb"])


# ----------------------------- parameter init (deterministic) ------------------------
def init_params(key):
    def nrm(key, shape, scale=0.02):
        return scale * jax.random.normal(key, shape, dtype=jnp.float32)

    keys = iter(jax.random.split(key, 64))
    params = {
        "word_emb": nrm(next(keys), (VOCAB, H)),
        "pos_emb": nrm(next(keys), (S, H)),
        "type_emb": nrm(next(keys), (TYPE_VOCAB, H)),
        "emb_g": jnp.ones((H,), jnp.float32),
        "emb_b": jnp.zeros((H,), jnp.float32),
        "layers": [],
        "clf_w": nrm(next(keys), (H, NUM_LABELS)),
        "clf_b": jnp.zeros((1, NUM_LABELS), jnp.float32),
    }
    for _ in range(NUM_LAYERS):
        lp = {
            "wq": nrm(next(keys), (H, H)), "bq": jnp.zeros((1, H), jnp.float32),
            "wk": nrm(next(keys), (H, H)), "bk": jnp.zeros((1, H), jnp.float32),
            "wv": nrm(next(keys), (H, H)), "bv": jnp.zeros((1, H), jnp.float32),
            "wo": nrm(next(keys), (H, H)), "bo": jnp.zeros((1, H), jnp.float32),
            "g1": jnp.ones((1, H), jnp.float32), "be1": jnp.zeros((1, H), jnp.float32),
            "wi": nrm(next(keys), (H, I)), "bi": jnp.zeros((1, I), jnp.float32),
            "wf": nrm(next(keys), (I, H)), "bf": jnp.zeros((1, H), jnp.float32),
            "g2": jnp.ones((1, H), jnp.float32), "be2": jnp.zeros((1, H), jnp.float32),
        }
        params["layers"].append(lp)
    return params


def pack_params_for_kernel(params):
    """Pack per-layer weights into a few stacked VMEM slabs (fused QKV, Wo|Wf, Wi, vector slab)."""
    Ls = params["layers"]
    wqkv = jnp.stack(
        [jnp.concatenate([lp["wq"], lp["wk"], lp["wv"]], axis=-1) for lp in Ls], axis=0)  # [L,H,3H]
    wof = jnp.stack(
        [jnp.concatenate([lp["wo"], lp["wf"]], axis=0) for lp in Ls], axis=0)             # [L,H+I,H]
    wi = jnp.stack([lp["wi"] for lp in Ls], axis=0)                                       # [L,H,I]

    # One [L, 8, 128] slab holding every per-layer bias / LayerNorm vector.
    vecs = np.zeros((NUM_LAYERS, 8, LANE), np.float32)
    for li, lp in enumerate(Ls):
        vecs[li, V_BQKV, :3 * H] = np.concatenate(
            [np.asarray(lp["bq"])[0], np.asarray(lp["bk"])[0], np.asarray(lp["bv"])[0]])
        vecs[li, V_BO, :H] = np.asarray(lp["bo"])[0]
        vecs[li, V_G1, :H] = np.asarray(lp["g1"])[0]
        vecs[li, V_BE1, :H] = np.asarray(lp["be1"])[0]
        vecs[li, V_BI, :I] = np.asarray(lp["bi"])[0]
        vecs[li, V_BF, :H] = np.asarray(lp["bf"])[0]
        vecs[li, V_G2, :H] = np.asarray(lp["g2"])[0]
        vecs[li, V_BE2, :H] = np.asarray(lp["be2"])[0]

    # classifier: pad to 128 lanes; padded bias = -1e9 so padded logits drop out of softmax
    cw = jnp.zeros((H, LANE), jnp.float32).at[:, :NUM_LABELS].set(params["clf_w"])
    cb = jnp.full((1, LANE), -1e9, jnp.float32).at[:, :NUM_LABELS].set(params["clf_b"])
    embln = jnp.stack([params["emb_g"], params["emb_b"]], axis=0)                          # [2,H]

    return {"wqkv": wqkv, "wof": wof, "wi": wi, "vecs": jnp.asarray(vecs),
            "cw": cw, "cb": cb, "embln": embln}


# ----------------------------- full forward (Pallas) ---------------------------------
def bert_classifier_forward(params, input_ids, attention_mask):
    # Embedding lookups (gathers): plain-JAX glue.  Embedding LayerNorm is fused in the kernel.
    emb = (params["word_emb"][input_ids]
           + params["pos_emb"][None, :, :]
           + params["type_emb"][0][None, None, :]).reshape(BS, H)

    # Mask bias computed ONCE here.
    mask_bias = ((1.0 - attention_mask.astype(jnp.float32)) * (-1e9))[:, None, :]   # [B,1,S]

    packed = pack_params_for_kernel(params)
    probs_pad = fused_bert_pallas(emb, mask_bias, packed)        # [8, 128] lane/sublane-dense
    return probs_pad[:B, :NUM_LABELS]


# ----------------------------- pure-JAX reference for verification -------------------
def reference_forward(params, input_ids, attention_mask):
    def ln(x, g, b):
        mu = jnp.mean(x, axis=-1, keepdims=True)
        var = jnp.mean((x - mu) ** 2, axis=-1, keepdims=True)
        return (x - mu) * jax.lax.rsqrt(var + LN_EPS) * g + b

    def gelu(x):
        return 0.5 * x * (1.0 + jnp.tanh(0.7978845608028654 * (x + 0.044715 * x ** 3)))

    emb = (params["word_emb"][input_ids]
           + params["pos_emb"][None, :, :]
           + params["type_emb"][0][None, None, :])
    x = ln(emb, params["emb_g"], params["emb_b"])
    mask = attention_mask.astype(jnp.float32)
    mask_bias = (1.0 - mask)[:, None, None, :] * (-1e9)   # [B,1,1,S]

    for lp in params["layers"]:
        q = x @ lp["wq"] + lp["bq"]
        k = x @ lp["wk"] + lp["bk"]
        v = x @ lp["wv"] + lp["bv"]
        qh = q.reshape(B, S, NH, HD).transpose(0, 2, 1, 3)
        kh = k.reshape(B, S, NH, HD).transpose(0, 2, 1, 3)
        vh = v.reshape(B, S, NH, HD).transpose(0, 2, 1, 3)
        scores = jnp.einsum("bhqd,bhkd->bhqk", qh, kh) / math.sqrt(HD) + mask_bias
        probs = jax.nn.softmax(scores, axis=-1)
        ctx = jnp.einsum("bhqk,bhkd->bhqd", probs, vh).transpose(0, 2, 1, 3).reshape(B, S, H)
        x1 = ln(x + ctx @ lp["wo"] + lp["bo"], lp["g1"], lp["be1"])
        ffn = gelu(x1 @ lp["wi"] + lp["bi"]) @ lp["wf"] + lp["bf"]
        x = ln(x1 + ffn, lp["g2"], lp["be2"])

    logits = x[:, 0, :] @ params["clf_w"] + params["clf_b"]
    return jax.nn.softmax(logits, axis=-1)


# ----------------------------- main ---------------------------------------------------
if __name__ == "__main__":
    key = jax.random.PRNGKey(0)
    k_param, k_ids = jax.random.split(key)

    params = init_params(k_param)
    input_ids = jax.random.randint(k_ids, (B, S), 0, VOCAB, dtype=jnp.int32)
    attention_mask = jnp.ones((B, S), dtype=jnp.int32).at[1, 6:].set(0)

    preds = bert_classifier_forward(params, input_ids, attention_mask)
    preds = jax.block_until_ready(preds)

    # Highest-precision reference matmuls; tolerance covers MXU f32 multi-pass rounding modes.
    with jax.default_matmul_precision("highest"):
        ref = reference_forward(params, input_ids, attention_mask)
    ref = jax.block_until_ready(ref)

    np.testing.assert_allclose(np.asarray(preds), np.asarray(ref), rtol=1e-3, atol=1e-4)
    assert preds.shape == (B, NUM_LABELS)

    print("KERNEL_OK")
</pallas_src>

<mosaic_0001>
module attributes {stable_mosaic.version = 11 : i64} {
  func.func @fused_bert_kernel(%arg0: memref<16x32xf32, #tpu.memory_space<vmem>>, %arg1: memref<2x1x8xf32, #tpu.memory_space<vmem>>, %arg2: memref<2x32xf32, #tpu.memory_space<vmem>>, %arg3: memref<2x32x96xf32, #tpu.memory_space<vmem>>, %arg4: memref<2x96x32xf32, #tpu.memory_space<vmem>>, %arg5: memref<2x32x64xf32, #tpu.memory_space<vmem>>, %arg6: memref<2x8x128xf32, #tpu.memory_space<vmem>>, %arg7: memref<32x128xf32, #tpu.memory_space<vmem>>, %arg8: memref<1x128xf32, #tpu.memory_space<vmem>>, %arg9: memref<8x128xf32, #tpu.memory_space<vmem>>) attributes {dimension_semantics = [], scalar_prefetch = 0 : i64, scratch_operands = 0 : i64, tpu.core_type = #tpu.core_type<tc>} {
    %c0 = arith.constant 0 : index
    %c0_0 = arith.constant 0 : index
    %0 = vector.load %arg0[%c0, %c0_0] : memref<16x32xf32, #tpu.memory_space<vmem>>, vector<16x32xf32>
    %c0_1 = arith.constant 0 : index
    %c0_2 = arith.constant 0 : index
    %1 = vector.load %arg2[%c0_1, %c0_2] : memref<2x32xf32, #tpu.memory_space<vmem>>, vector<1x32xf32>
    %c1 = arith.constant 1 : index
    %c0_3 = arith.constant 0 : index
    %2 = vector.load %arg2[%c1, %c0_3] : memref<2x32xf32, #tpu.memory_space<vmem>>, vector<1x32xf32>
    %cst = arith.constant dense<0.000000e+00> : vector<16xf32>
    %3 = vector.multi_reduction <add>, %0, %cst [1] : vector<16x32xf32> to vector<16xf32>
    %4 = vector.shape_cast %3 : vector<16xf32> to vector<16x1xf32>
    %cst_4 = arith.constant 3.200000e+01 : f32
    %5 = vector.broadcast %cst_4 : f32 to vector<16x1xf32>
    %6 = arith.divf %4, %5 : vector<16x1xf32>
    %7 = vector.broadcast %6 : vector<16x1xf32> to vector<16x32xf32>
    %8 = arith.subf %0, %7 : vector<16x32xf32>
    %9 = arith.mulf %8, %8 : vector<16x32xf32>
    %cst_5 = arith.constant dense<0.000000e+00> : vector<16xf32>
    %10 = vector.multi_reduction <add>, %9, %cst_5 [1] : vector<16x32xf32> to vector<16xf32>
    %11 = vector.shape_cast %10 : vector<16xf32> to vector<16x1xf32>
    %cst_6 = arith.constant 3.200000e+01 : f32
    %12 = vector.broadcast %cst_6 : f32 to vector<16x1xf32>
    %13 = arith.divf %11, %12 : vector<16x1xf32>
    %14 = vector.broadcast %6 : vector<16x1xf32> to vector<16x32xf32>
    %15 = arith.subf %0, %14 : vector<16x32xf32>
    %cst_7 = arith.constant 9.99999996E-13 : f32
    %16 = vector.broadcast %cst_7 : f32 to vector<16x1xf32>
    %17 = arith.addf %13, %16 : vector<16x1xf32>
    %18 = math.rsqrt %17 : vector<16x1xf32>
    %19 = vector.broadcast %18 : vector<16x1xf32> to vector<16x32xf32>
    %20 = arith.mulf %15, %19 : vector<16x32xf32>
    %21 = vector.broadcast %1 : vector<1x32xf32> to vector<16x32xf32>
    %22 = arith.mulf %20, %21 : vector<16x32xf32>
    %23 = vector.broadcast %2 : vector<1x32xf32> to vector<16x32xf32>
    %24 = arith.addf %22, %23 : vector<16x32xf32>
    %c0_8 = arith.constant 0 : index
    %c0_9 = arith.constant 0 : index
    %c0_10 = arith.constant 0 : index
    %25 = vector.load %arg1[%c0_8, %c0_9, %c0_10] : memref<2x1x8xf32, #tpu.memory_space<vmem>>, vector<2x1x8xf32>
    %c0_11 = arith.constant 0 : index
    %c0_12 = arith.constant 0 : index
    %c0_13 = arith.constant 0 : index
    %26 = vector.load %arg3[%c0_11, %c0_12, %c0_13] : memref<2x32x96xf32, #tpu.memory_space<vmem>>, vector<1x32x96xf32>
    %27 = vector.shape_cast %26 : vector<1x32x96xf32> to vector<32x96xf32>
    %cst_14 = arith.constant dense<0.000000e+00> : vector<16x96xf32>
    %28 = tpu.matmul %24, %27, %cst_14 {dimension_numbers = #tpu.dot_dimension_numbers<[1], [0], [0], [1], [0, 0, 1, 1], [], []>} : vector<16x32xf32>, vector<32x96xf32>, vector<16x96xf32> -> vector<16x96xf32>
    %c0_15 = arith.constant 0 : index
    %c0_16 = arith.constant 0 : index
    %c0_17 = arith.constant 0 : index
    %29 = vector.load %arg6[%c0_15, %c0_16, %c0_17] : memref<2x8x128xf32, #tpu.memory_space<vmem>>, vector<1x1x96xf32>
    %30 = vector.shape_cast %29 : vector<1x1x96xf32> to vector<1x96xf32>
    %31 = vector.broadcast %30 : vector<1x96xf32> to vector<16x96xf32>
    %32 = arith.addf %28, %31 : vector<16x96xf32>
    %33 = vector.extract_strided_slice %32 {offsets = [0, 0], sizes = [16, 16], strides = [1, 1]} : vector<16x96xf32> to vector<16x16xf32>
    %34 = vector.shape_cast %33 : vector<16x16xf32> to vector<2x8x16xf32>
    %35 = vector.extract_strided_slice %32 {offsets = [0, 32], sizes = [16, 16], strides = [1, 1]} : vector<16x96xf32> to vector<16x16xf32>
    %36 = vector.shape_cast %35 : vector<16x16xf32> to vector<2x8x16xf32>
    %37 = vector.extract_strided_slice %32 {offsets = [0, 64], sizes = [16, 16], strides = [1, 1]} : vector<16x96xf32> to vector<16x16xf32>
    %38 = vector.shape_cast %37 : vector<16x16xf32> to vector<2x8x16xf32>
    "tpu.trace_start"() <{level = 10 : i32, message = "bqd,bkd->bqk"}> : () -> ()
    %cst_18 = arith.constant dense<0.000000e+00> : vector<2x8x8xf32>
    %39 = tpu.matmul %34, %36, %cst_18 {dimension_numbers = #tpu.dot_dimension_numbers<[2], [2], [1], [1], [0, 0, 0, 1, 1, 1], [0], [0]>} : vector<2x8x16xf32>, vector<2x8x16xf32>, vector<2x8x8xf32> -> vector<2x8x8xf32>
    "tpu.trace_stop"() : () -> ()
    %cst_19 = arith.constant 2.500000e-01 : f32
    %40 = vector.broadcast %cst_19 : f32 to vector<2x8x8xf32>
    %41 = arith.mulf %39, %40 : vector<2x8x8xf32>
    %42 = vector.broadcast %25 : vector<2x1x8xf32> to vector<2x8x8xf32>
    %43 = arith.addf %41, %42 : vector<2x8x8xf32>
    %cst_20 = arith.constant dense<0xFF800000> : vector<2x8xf32>
    %44 = vector.multi_reduction <maximumf>, %43, %cst_20 [2] : vector<2x8x8xf32> to vector<2x8xf32>
    %45 = vector.shape_cast %44 : vector<2x8xf32> to vector<2x8x1xf32>
    %46 = vector.broadcast %45 : vector<2x8x1xf32> to vector<2x8x8xf32>
    %47 = arith.subf %43, %46 : vector<2x8x8xf32>
    %48 = math.exp %47 : vector<2x8x8xf32>
    %cst_21 = arith.constant dense<0.000000e+00> : vector<2x8xf32>
    %49 = vector.multi_reduction <add>, %48, %cst_21 [2] : vector<2x8x8xf32> to vector<2x8xf32>
    %50 = vector.shape_cast %49 : vector<2x8xf32> to vector<2x8x1xf32>
    %51 = tpu.reciprocal %50 : vector<2x8x1xf32> -> vector<2x8x1xf32>
    %52 = vector.broadcast %51 : vector<2x8x1xf32> to vector<2x8x8xf32>
    %53 = arith.mulf %48, %52 : vector<2x8x8xf32>
    "tpu.trace_start"() <{level = 10 : i32, message = "bqk,bkd->bqd"}> : () -> ()
    %cst_22 = arith.constant dense<0.000000e+00> : vector<2x8x16xf32>
    %54 = tpu.matmul %53, %38, %cst_22 {dimension_numbers = #tpu.dot_dimension_numbers<[2], [1], [1], [2], [0, 0, 0, 1, 1, 2], [0], [0]>} : vector<2x8x8xf32>, vector<2x8x16xf32>, vector<2x8x16xf32> -> vector<2x8x16xf32>
    "tpu.trace_stop"() : () -> ()
    %55 = vector.shape_cast %54 : vector<2x8x16xf32> to vector<16x16xf32>
    %56 = vector.extract_strided_slice %32 {offsets = [0, 16], sizes = [16, 16], strides = [1, 1]} : vector<16x96xf32> to vector<16x16xf32>
    %57 = vector.shape_cast %56 : vector<16x16xf32> to vector<2x8x16xf32>
    %58 = vector.extract_strided_slice %32 {offsets = [0, 48], sizes = [16, 16], strides = [1, 1]} : vector<16x96xf32> to vector<16x16xf32>
    %59 = vector.shape_cast %58 : vector<16x16xf32> to vector<2x8x16xf32>
    %60 = vector.extract_strided_slice %32 {offsets = [0, 80], sizes = [16, 16], strides = [1, 1]} : vector<16x96xf32> to vector<16x16xf32>
    %61 = vector.shape_cast %60 : vector<16x16xf32> to vector<2x8x16xf32>
    "tpu.trace_start"() <{level = 10 : i32, message = "bqd,bkd->bqk"}> : () -> ()
    %cst_23 = arith.constant dense<0.000000e+00> : vector<2x8x8xf32>
    %62 = tpu.matmul %57, %59, %cst_23 {dimension_numbers = #tpu.dot_dimension_numbers<[2], [2], [1], [1], [0, 0, 0, 1, 1, 1], [0], [0]>} : vector<2x8x16xf32>, vector<2x8x16xf32>, vector<2x8x8xf32> -> vector<2x8x8xf32>
    "tpu.trace_stop"() : () -> ()
    %cst_24 = arith.constant 2.500000e-01 : f32
    %63 = vector.broadcast %cst_24 : f32 to vector<2x8x8xf32>
    %64 = arith.mulf %62, %63 : vector<2x8x8xf32>
    %65 = vector.broadcast %25 : vector<2x1x8xf32> to vector<2x8x8xf32>
    %66 = arith.addf %64, %65 : vector<2x8x8xf32>
    %cst_25 = arith.constant dense<0xFF800000> : vector<2x8xf32>
    %67 = vector.multi_reduction <maximumf>, %66, %cst_25 [2] : vector<2x8x8xf32> to vector<2x8xf32>
    %68 = vector.shape_cast %67 : vector<2x8xf32> to vector<2x8x1xf32>
    %69 = vector.broadcast %68 : vector<2x8x1xf32> to vector<2x8x8xf32>
    %70 = arith.subf %66, %69 : vector<2x8x8xf32>
    %71 = math.exp %70 : vector<2x8x8xf32>
    %cst_26 = arith.constant dense<0.000000e+00> : vector<2x8xf32>
    %72 = vector.multi_reduction <add>, %71, %cst_26 [2] : vector<2x8x8xf32> to vector<2x8xf32>
    %73 = vector.shape_cast %72 : vector<2x8xf32> to vector<2x8x1xf32>
    %74 = tpu.reciprocal %73 : vector<2x8x1xf32> -> vector<2x8x1xf32>
    %75 = vector.broadcast %74 : vector<2x8x1xf32> to vector<2x8x8xf32>
    %76 = arith.mulf %71, %75 : vector<2x8x8xf32>
    "tpu.trace_start"() <{level = 10 : i32, message = "bqk,bkd->bqd"}> : () -> ()
    %cst_27 = arith.constant dense<0.000000e+00> : vector<2x8x16xf32>
    %77 = tpu.matmul %76, %61, %cst_27 {dimension_numbers = #tpu.dot_dimension_numbers<[2], [1], [1], [2], [0, 0, 0, 1, 1, 2], [0], [0]>} : vector<2x8x8xf32>, vector<2x8x16xf32>, vector<2x8x16xf32> -> vector<2x8x16xf32>
    "tpu.trace_stop"() : () -> ()
    %78 = vector.shape_cast %77 : vector<2x8x16xf32> to vector<16x16xf32>
    %79 = tpu.concatenate %55, %78 in 1 : vector<16x16xf32>, vector<16x16xf32> -> vector<16x32xf32>
    %c0_28 = arith.constant 0 : index
    %c0_29 = arith.constant 0 : index
    %c0_30 = arith.constant 0 : index
    %80 = vector.load %arg4[%c0_28, %c0_29, %c0_30] : memref<2x96x32xf32, #tpu.memory_space<vmem>>, vector<1x32x32xf32>
    %81 = vector.shape_cast %80 : vector<1x32x32xf32> to vector<32x32xf32>
    %cst_31 = arith.constant dense<0.000000e+00> : vector<16x32xf32>
    %82 = tpu.matmul %79, %81, %cst_31 {dimension_numbers = #tpu.dot_dimension_numbers<[1], [0], [0], [1], [0, 0, 1, 1], [], []>} : vector<16x32xf32>, vector<32x32xf32>, vector<16x32xf32> -> vector<16x32xf32>
    %c0_32 = arith.constant 0 : index
    %c1_33 = arith.constant 1 : index
    %c0_34 = arith.constant 0 : index
    %83 = vector.load %arg6[%c0_32, %c1_33, %c0_34] : memref<2x8x128xf32, #tpu.memory_space<vmem>>, vector<1x1x32xf32>
    %84 = vector.shape_cast %83 : vector<1x1x32xf32> to vector<1x32xf32>
    %85 = vector.broadcast %84 : vector<1x32xf32> to vector<16x32xf32>
    %86 = arith.addf %82, %85 : vector<16x32xf32>
    %87 = arith.addf %24, %86 : vector<16x32xf32>
    %c0_35 = arith.constant 0 : index
    %c2 = arith.constant 2 : index
    %c0_36 = arith.constant 0 : index
    %88 = vector.load %arg6[%c0_35, %c2, %c0_36] : memref<2x8x128xf32, #tpu.memory_space<vmem>>, vector<1x1x32xf32>
    %89 = vector.shape_cast %88 : vector<1x1x32xf32> to vector<1x32xf32>
    %c0_37 = arith.constant 0 : index
    %c3 = arith.constant 3 : index
    %c0_38 = arith.constant 0 : index
    %90 = vector.load %arg6[%c0_37, %c3, %c0_38] : memref<2x8x128xf32, #tpu.memory_space<vmem>>, vector<1x1x32xf32>
    %91 = vector.shape_cast %90 : vector<1x1x32xf32> to vector<1x32xf32>
    %cst_39 = arith.constant dense<0.000000e+00> : vector<16xf32>
    %92 = vector.multi_reduction <add>, %87, %cst_39 [1] : vector<16x32xf32> to vector<16xf32>
    %93 = vector.shape_cast %92 : vector<16xf32> to vector<16x1xf32>
    %cst_40 = arith.constant 3.200000e+01 : f32
    %94 = vector.broadcast %cst_40 : f32 to vector<16x1xf32>
    %95 = arith.divf %93, %94 : vector<16x1xf32>
    %96 = vector.broadcast %95 : vector<16x1xf32> to vector<16x32xf32>
    %97 = arith.subf %87, %96 : vector<16x32xf32>
    %98 = arith.mulf %97, %97 : vector<16x32xf32>
    %cst_41 = arith.constant dense<0.000000e+00> : vector<16xf32>
    %99 = vector.multi_reduction <add>, %98, %cst_41 [1] : vector<16x32xf32> to vector<16xf32>
    %100 = vector.shape_cast %99 : vector<16xf32> to vector<16x1xf32>
    %cst_42 = arith.constant 3.200000e+01 : f32
    %101 = vector.broadcast %cst_42 : f32 to vector<16x1xf32>
    %102 = arith.divf %100, %101 : vector<16x1xf32>
    %103 = vector.broadcast %95 : vector<16x1xf32> to vector<16x32xf32>
    %104 = arith.subf %87, %103 : vector<16x32xf32>
    %cst_43 = arith.constant 9.99999996E-13 : f32
    %105 = vector.broadcast %cst_43 : f32 to vector<16x1xf32>
    %106 = arith.addf %102, %105 : vector<16x1xf32>
    %107 = math.rsqrt %106 : vector<16x1xf32>
    %108 = vector.broadcast %107 : vector<16x1xf32> to vector<16x32xf32>
    %109 = arith.mulf %104, %108 : vector<16x32xf32>
    %110 = vector.broadcast %89 : vector<1x32xf32> to vector<16x32xf32>
    %111 = arith.mulf %109, %110 : vector<16x32xf32>
    %112 = vector.broadcast %91 : vector<1x32xf32> to vector<16x32xf32>
    %113 = arith.addf %111, %112 : vector<16x32xf32>
    %c0_44 = arith.constant 0 : index
    %c0_45 = arith.constant 0 : index
    %c0_46 = arith.constant 0 : index
    %114 = vector.load %arg5[%c0_44, %c0_45, %c0_46] : memref<2x32x64xf32, #tpu.memory_space<vmem>>, vector<1x32x64xf32>
    %115 = vector.shape_cast %114 : vector<1x32x64xf32> to vector<32x64xf32>
    %cst_47 = arith.constant dense<0.000000e+00> : vector<16x64xf32>
    %116 = tpu.matmul %113, %115, %cst_47 {dimension_numbers = #tpu.dot_dimension_numbers<[1], [0], [0], [1], [0, 0, 1, 1], [], []>} : vector<16x32xf32>, vector<32x64xf32>, vector<16x64xf32> -> vector<16x64xf32>
    %c0_48 = arith.constant 0 : index
    %c4 = arith.constant 4 : index
    %c0_49 = arith.constant 0 : index
    %117 = vector.load %arg6[%c0_48, %c4, %c0_49] : memref<2x8x128xf32, #tpu.memory_space<vmem>>, vector<1x1x64xf32>
    %118 = vector.shape_cast %117 : vector<1x1x64xf32> to vector<1x64xf32>
    %119 = vector.broadcast %118 : vector<1x64xf32> to vector<16x64xf32>
    %120 = arith.addf %116, %119 : vector<16x64xf32>
    %cst_50 = arith.constant 5.000000e-01 : f32
    %121 = vector.broadcast %cst_50 : f32 to vector<16x64xf32>
    %122 = arith.mulf %121, %120 : vector<16x64xf32>
    %cst_51 = arith.constant 4.471500e-02 : f32
    %123 = vector.broadcast %cst_51 : f32 to vector<16x64xf32>
    %124 = arith.mulf %123, %120 : vector<16x64xf32>
    %125 = arith.mulf %124, %120 : vector<16x64xf32>
    %126 = arith.mulf %125, %120 : vector<16x64xf32>
    %127 = arith.addf %120, %126 : vector<16x64xf32>
    %cst_52 = arith.constant 0.797884583 : f32
    %128 = vector.broadcast %cst_52 : f32 to vector<16x64xf32>
    %129 = arith.mulf %128, %127 : vector<16x64xf32>
    %130 = math.tanh %129 : vector<16x64xf32>
    %cst_53 = arith.constant 1.000000e+00 : f32
    %131 = vector.broadcast %cst_53 : f32 to vector<16x64xf32>
    %132 = arith.addf %131, %130 : vector<16x64xf32>
    %133 = arith.mulf %122, %132 : vector<16x64xf32>
    %c0_54 = arith.constant 0 : index
    %c32 = arith.constant 32 : index
    %c0_55 = arith.constant 0 : index
    %134 = vector.load %arg4[%c0_54, %c32, %c0_55] : memref<2x96x32xf32, #tpu.memory_space<vmem>>, vector<1x64x32xf32>
    %135 = vector.shape_cast %134 : vector<1x64x32xf32> to vector<64x32xf32>
    %cst_56 = arith.constant dense<0.000000e+00> : vector<16x32xf32>
    %136 = tpu.matmul %133, %135, %cst_56 {dimension_numbers = #tpu.dot_dimension_numbers<[1], [0], [0], [1], [0, 0, 1, 1], [], []>} : vector<16x64xf32>, vector<64x32xf32>, vector<16x32xf32> -> vector<16x32xf32>
    %c0_57 = arith.constant 0 : index
    %c5 = arith.constant 5 : index
    %c0_58 = arith.constant 0 : index
    %137 = vector.load %arg6[%c0_57, %c5, %c0_58] : memref<2x8x128xf32, #tpu.memory_space<vmem>>, vector<1x1x32xf32>
    %138 = vector.shape_cast %137 : vector<1x1x32xf32> to vector<1x32xf32>
    %139 = vector.broadcast %138 : vector<1x32xf32> to vector<16x32xf32>
    %140 = arith.addf %136, %139 : vector<16x32xf32>
    %141 = arith.addf %113, %140 : vector<16x32xf32>
    %c0_59 = arith.constant 0 : index
    %c6 = arith.constant 6 : index
    %c0_60 = arith.constant 0 : index
    %142 = vector.load %arg6[%c0_59, %c6, %c0_60] : memref<2x8x128xf32, #tpu.memory_space<vmem>>, vector<1x1x32xf32>
    %143 = vector.shape_cast %142 : vector<1x1x32xf32> to vector<1x32xf32>
    %c0_61 = arith.constant 0 : index
    %c7 = arith.constant 7 : index
    %c0_62 = arith.constant 0 : index
    %144 = vector.load %arg6[%c0_61, %c7, %c0_62] : memref<2x8x128xf32, #tpu.memory_space<vmem>>, vector<1x1x32xf32>
    %145 = vector.shape_cast %144 : vector<1x1x32xf32> to vector<1x32xf32>
    %cst_63 = arith.constant dense<0.000000e+00> : vector<16xf32>
    %146 = vector.multi_reduction <add>, %141, %cst_63 [1] : vector<16x32xf32> to vector<16xf32>
    %147 = vector.shape_cast %146 : vector<16xf32> to vector<16x1xf32>
    %cst_64 = arith.constant 3.200000e+01 : f32
    %148 = vector.broadcast %cst_64 : f32 to vector<16x1xf32>
    %149 = arith.divf %147, %148 : vector<16x1xf32>
    %150 = vector.broadcast %149 : vector<16x1xf32> to vector<16x32xf32>
    %151 = arith.subf %141, %150 : vector<16x32xf32>
    %152 = arith.mulf %151, %151 : vector<16x32xf32>
    %cst_65 = arith.constant dense<0.000000e+00> : vector<16xf32>
    %153 = vector.multi_reduction <add>, %152, %cst_65 [1] : vector<16x32xf32> to vector<16xf32>
    %154 = vector.shape_cast %153 : vector<16xf32> to vector<16x1xf32>
    %cst_66 = arith.constant 3.200000e+01 : f32
    %155 = vector.broadcast %cst_66 : f32 to vector<16x1xf32>
    %156 = arith.divf %154, %155 : vector<16x1xf32>
    %157 = vector.broadcast %149 : vector<16x1xf32> to vector<16x32xf32>
    %158 = arith.subf %141, %157 : vector<16x32xf32>
    %cst_67 = arith.constant 9.99999996E-13 : f32
    %159 = vector.broadcast %cst_67 : f32 to vector<16x1xf32>
    %160 = arith.addf %156, %159 : vector<16x1xf32>
    %161 = math.rsqrt %160 : vector<16x1xf32>
    %162 = vector.broadcast %161 : vector<16x1xf32> to vector<16x32xf32>
    %163 = arith.mulf %158, %162 : vector<16x32xf32>
    %164 = vector.broadcast %143 : vector<1x32xf32> to vector<16x32xf32>
    %165 = arith.mulf %163, %164 : vector<16x32xf32>
    %166 = vector.broadcast %145 : vector<1x32xf32> to vector<16x32xf32>
    %167 = arith.addf %165, %166 : vector<16x32xf32>
    %c1_68 = arith.constant 1 : index
    %c0_69 = arith.constant 0 : index
    %c0_70 = arith.constant 0 : index
    %168 = vector.load %arg3[%c1_68, %c0_69, %c0_70] : memref<2x32x96xf32, #tpu.memory_space<vmem>>, vector<1x32x96xf32>
    %169 = vector.shape_cast %168 : vector<1x32x96xf32> to vector<32x96xf32>
    %cst_71 = arith.constant dense<0.000000e+00> : vector<16x96xf32>
    %170 = tpu.matmul %167, %169, %cst_71 {dimension_numbers = #tpu.dot_dimension_numbers<[1], [0], [0], [1], [0, 0, 1, 1], [], []>} : vector<16x32xf32>, vector<32x96xf32>, vector<16x96xf32> -> vector<16x96xf32>
    %c1_72 = arith.constant 1 : index
    %c0_73 = arith.constant 0 : index
    %c0_74 = arith.constant 0 : index
    %171 = vector.load %arg6[%c1_72, %c0_73, %c0_74] : memref<2x8x128xf32, #tpu.memory_space<vmem>>, vector<1x1x96xf32>
    %172 = vector.shape_cast %171 : vector<1x1x96xf32> to vector<1x96xf32>
    %173 = vector.broadcast %172 : vector<1x96xf32> to vector<16x96xf32>
    %174 = arith.addf %170, %173 : vector<16x96xf32>
    %175 = vector.extract_strided_slice %174 {offsets = [0, 0], sizes = [16, 16], strides = [1, 1]} : vector<16x96xf32> to vector<16x16xf32>
    %176 = vector.shape_cast %175 : vector<16x16xf32> to vector<2x8x16xf32>
    %177 = vector.extract_strided_slice %174 {offsets = [0, 32], sizes = [16, 16], strides = [1, 1]} : vector<16x96xf32> to vector<16x16xf32>
    %178 = vector.shape_cast %177 : vector<16x16xf32> to vector<2x8x16xf32>
    %179 = vector.extract_strided_slice %174 {offsets = [0, 64], sizes = [16, 16], strides = [1, 1]} : vector<16x96xf32> to vector<16x16xf32>
    %180 = vector.shape_cast %179 : vector<16x16xf32> to vector<2x8x16xf32>
    "tpu.trace_start"() <{level = 10 : i32, message = "bqd,bkd->bqk"}> : () -> ()
    %cst_75 = arith.constant dense<0.000000e+00> : vector<2x8x8xf32>
    %181 = tpu.matmul %176, %178, %cst_75 {dimension_numbers = #tpu.dot_dimension_numbers<[2], [2], [1], [1], [0, 0, 0, 1, 1, 1], [0], [0]>} : vector<2x8x16xf32>, vector<2x8x16xf32>, vector<2x8x8xf32> -> vector<2x8x8xf32>
    "tpu.trace_stop"() : () -> ()
    %cst_76 = arith.constant 2.500000e-01 : f32
    %182 = vector.broadcast %cst_76 : f32 to vector<2x8x8xf32>
    %183 = arith.mulf %181, %182 : vector<2x8x8xf32>
    %184 = vector.broadcast %25 : vector<2x1x8xf32> to vector<2x8x8xf32>
    %185 = arith.addf %183, %184 : vector<2x8x8xf32>
    %cst_77 = arith.constant dense<0xFF800000> : vector<2x8xf32>
    %186 = vector.multi_reduction <maximumf>, %185, %cst_77 [2] : vector<2x8x8xf32> to vector<2x8xf32>
    %187 = vector.shape_cast %186 : vector<2x8xf32> to vector<2x8x1xf32>
    %188 = vector.broadcast %187 : vector<2x8x1xf32> to vector<2x8x8xf32>
    %189 = arith.subf %185, %188 : vector<2x8x8xf32>
    %190 = math.exp %189 : vector<2x8x8xf32>
    %cst_78 = arith.constant dense<0.000000e+00> : vector<2x8xf32>
    %191 = vector.multi_reduction <add>, %190, %cst_78 [2] : vector<2x8x8xf32> to vector<2x8xf32>
    %192 = vector.shape_cast %191 : vector<2x8xf32> to vector<2x8x1xf32>
    %193 = tpu.reciprocal %192 : vector<2x8x1xf32> -> vector<2x8x1xf32>
    %194 = vector.broadcast %193 : vector<2x8x1xf32> to vector<2x8x8xf32>
    %195 = arith.mulf %190, %194 : vector<2x8x8xf32>
    "tpu.trace_start"() <{level = 10 : i32, message = "bqk,bkd->bqd"}> : () -> ()
    %cst_79 = arith.constant dense<0.000000e+00> : vector<2x8x16xf32>
    %196 = tpu.matmul %195, %180, %cst_79 {dimension_numbers = #tpu.dot_dimension_numbers<[2], [1], [1], [2], [0, 0, 0, 1, 1, 2], [0], [0]>} : vector<2x8x8xf32>, vector<2x8x16xf32>, vector<2x8x16xf32> -> vector<2x8x16xf32>
    "tpu.trace_stop"() : () -> ()
    %197 = vector.shape_cast %196 : vector<2x8x16xf32> to vector<16x16xf32>
    %198 = vector.extract_strided_slice %174 {offsets = [0, 16], sizes = [16, 16], strides = [1, 1]} : vector<16x96xf32> to vector<16x16xf32>
    %199 = vector.shape_cast %198 : vector<16x16xf32> to vector<2x8x16xf32>
    %200 = vector.extract_strided_slice %174 {offsets = [0, 48], sizes = [16, 16], strides = [1, 1]} : vector<16x96xf32> to vector<16x16xf32>
    %201 = vector.shape_cast %200 : vector<16x16xf32> to vector<2x8x16xf32>
    %202 = vector.extract_strided_slice %174 {offsets = [0, 80], sizes = [16, 16], strides = [1, 1]} : vector<16x96xf32> to vector<16x16xf32>
    %203 = vector.shape_cast %202 : vector<16x16xf32> to vector<2x8x16xf32>
    "tpu.trace_start"() <{level = 10 : i32, message = "bqd,bkd->bqk"}> : () -> ()
    %cst_80 = arith.constant dense<0.000000e+00> : vector<2x8x8xf32>
    %204 = tpu.matmul %199, %201, %cst_80 {dimension_numbers = #tpu.dot_dimension_numbers<[2], [2], [1], [1], [0, 0, 0, 1, 1, 1], [0], [0]>} : vector<2x8x16xf32>, vector<2x8x16xf32>, vector<2x8x8xf32> -> vector<2x8x8xf32>
    "tpu.trace_stop"() : () -> ()
    %cst_81 = arith.constant 2.500000e-01 : f32
    %205 = vector.broadcast %cst_81 : f32 to vector<2x8x8xf32>
    %206 = arith.mulf %204, %205 : vector<2x8x8xf32>
    %207 = vector.broadcast %25 : vector<2x1x8xf32> to vector<2x8x8xf32>
    %208 = arith.addf %206, %207 : vector<2x8x8xf32>
    %cst_82 = arith.constant dense<0xFF800000> : vector<2x8xf32>
    %209 = vector.multi_reduction <maximumf>, %208, %cst_82 [2] : vector<2x8x8xf32> to vector<2x8xf32>
    %210 = vector.shape_cast %209 : vector<2x8xf32> to vector<2x8x1xf32>
    %211 = vector.broadcast %210 : vector<2x8x1xf32> to vector<2x8x8xf32>
    %212 = arith.subf %208, %211 : vector<2x8x8xf32>
    %213 = math.exp %212 : vector<2x8x8xf32>
    %cst_83 = arith.constant dense<0.000000e+00> : vector<2x8xf32>
    %214 = vector.multi_reduction <add>, %213, %cst_83 [2] : vector<2x8x8xf32> to vector<2x8xf32>
    %215 = vector.shape_cast %214 : vector<2x8xf32> to vector<2x8x1xf32>
    %216 = tpu.reciprocal %215 : vector<2x8x1xf32> -> vector<2x8x1xf32>
    %217 = vector.broadcast %216 : vector<2x8x1xf32> to vector<2x8x8xf32>
    %218 = arith.mulf %213, %217 : vector<2x8x8xf32>
    "tpu.trace_start"() <{level = 10 : i32, message = "bqk,bkd->bqd"}> : () -> ()
    %cst_84 = arith.constant dense<0.000000e+00> : vector<2x8x16xf32>
    %219 = tpu.matmul %218, %203, %cst_84 {dimension_numbers = #tpu.dot_dimension_numbers<[2], [1], [1], [2], [0, 0, 0, 1, 1, 2], [0], [0]>} : vector<2x8x8xf32>, vector<2x8x16xf32>, vector<2x8x16xf32> -> vector<2x8x16xf32>
    "tpu.trace_stop"() : () -> ()
    %220 = vector.shape_cast %219 : vector<2x8x16xf32> to vector<16x16xf32>
    %221 = tpu.concatenate %197, %220 in 1 : vector<16x16xf32>, vector<16x16xf32> -> vector<16x32xf32>
    %c1_85 = arith.constant 1 : index
    %c0_86 = arith.constant 0 : index
    %c0_87 = arith.constant 0 : index
    %222 = vector.load %arg4[%c1_85, %c0_86, %c0_87] : memref<2x96x32xf32, #tpu.memory_space<vmem>>, vector<1x32x32xf32>
    %223 = vector.shape_cast %222 : vector<1x32x32xf32> to vector<32x32xf32>
    %cst_88 = arith.constant dense<0.000000e+00> : vector<16x32xf32>
    %224 = tpu.matmul %221, %223, %cst_88 {dimension_numbers = #tpu.dot_dimension_numbers<[1], [0], [0], [1], [0, 0, 1, 1], [], []>} : vector<16x32xf32>, vector<32x32xf32>, vector<16x32xf32> -> vector<16x32xf32>
    %c1_89 = arith.constant 1 : index
    %c1_90 = arith.constant 1 : index
    %c0_91 = arith.constant 0 : index
    %225 = vector.load %arg6[%c1_89, %c1_90, %c0_91] : memref<2x8x128xf32, #tpu.memory_space<vmem>>, vector<1x1x32xf32>
    %226 = vector.shape_cast %225 : vector<1x1x32xf32> to vector<1x32xf32>
    %227 = vector.broadcast %226 : vector<1x32xf32> to vector<16x32xf32>
    %228 = arith.addf %224, %227 : vector<16x32xf32>
    %229 = arith.addf %167, %228 : vector<16x32xf32>
    %c1_92 = arith.constant 1 : index
    %c2_93 = arith.constant 2 : index
    %c0_94 = arith.constant 0 : index
    %230 = vector.load %arg6[%c1_92, %c2_93, %c0_94] : memref<2x8x128xf32, #tpu.memory_space<vmem>>, vector<1x1x32xf32>
    %231 = vector.shape_cast %230 : vector<1x1x32xf32> to vector<1x32xf32>
    %c1_95 = arith.constant 1 : index
    %c3_96 = arith.constant 3 : index
    %c0_97 = arith.constant 0 : index
    %232 = vector.load %arg6[%c1_95, %c3_96, %c0_97] : memref<2x8x128xf32, #tpu.memory_space<vmem>>, vector<1x1x32xf32>
    %233 = vector.shape_cast %232 : vector<1x1x32xf32> to vector<1x32xf32>
    %cst_98 = arith.constant dense<0.000000e+00> : vector<16xf32>
    %234 = vector.multi_reduction <add>, %229, %cst_98 [1] : vector<16x32xf32> to vector<16xf32>
    %235 = vector.shape_cast %234 : vector<16xf32> to vector<16x1xf32>
    %cst_99 = arith.constant 3.200000e+01 : f32
    %236 = vector.broadcast %cst_99 : f32 to vector<16x1xf32>
    %237 = arith.divf %235, %236 : vector<16x1xf32>
    %238 = vector.broadcast %237 : vector<16x1xf32> to vector<16x32xf32>
    %239 = arith.subf %229, %238 : vector<16x32xf32>
    %240 = arith.mulf %239, %239 : vector<16x32xf32>
    %cst_100 = arith.constant dense<0.000000e+00> : vector<16xf32>
    %241 = vector.multi_reduction <add>, %240, %cst_100 [1] : vector<16x32xf32> to vector<16xf32>
    %242 = vector.shape_cast %241 : vector<16xf32> to vector<16x1xf32>
    %cst_101 = arith.constant 3.200000e+01 : f32
    %243 = vector.broadcast %cst_101 : f32 to vector<16x1xf32>
    %244 = arith.divf %242, %243 : vector<16x1xf32>
    %245 = vector.broadcast %237 : vector<16x1xf32> to vector<16x32xf32>
    %246 = arith.subf %229, %245 : vector<16x32xf32>
    %cst_102 = arith.constant 9.99999996E-13 : f32
    %247 = vector.broadcast %cst_102 : f32 to vector<16x1xf32>
    %248 = arith.addf %244, %247 : vector<16x1xf32>
    %249 = math.rsqrt %248 : vector<16x1xf32>
    %250 = vector.broadcast %249 : vector<16x1xf32> to vector<16x32xf32>
    %251 = arith.mulf %246, %250 : vector<16x32xf32>
    %252 = vector.broadcast %231 : vector<1x32xf32> to vector<16x32xf32>
    %253 = arith.mulf %251, %252 : vector<16x32xf32>
    %254 = vector.broadcast %233 : vector<1x32xf32> to vector<16x32xf32>
    %255 = arith.addf %253, %254 : vector<16x32xf32>
    %c1_103 = arith.constant 1 : index
    %c0_104 = arith.constant 0 : index
    %c0_105 = arith.constant 0 : index
    %256 = vector.load %arg5[%c1_103, %c0_104, %c0_105] : memref<2x32x64xf32, #tpu.memory_space<vmem>>, vector<1x32x64xf32>
    %257 = vector.shape_cast %256 : vector<1x32x64xf32> to vector<32x64xf32>
    %cst_106 = arith.constant dense<0.000000e+00> : vector<16x64xf32>
    %258 = tpu.matmul %255, %257, %cst_106 {dimension_numbers = #tpu.dot_dimension_numbers<[1], [0], [0], [1], [0, 0, 1, 1], [], []>} : vector<16x32xf32>, vector<32x64xf32>, vector<16x64xf32> -> vector<16x64xf32>
    %c1_107 = arith.constant 1 : index
    %c4_108 = arith.constant 4 : index
    %c0_109 = arith.constant 0 : index
    %259 = vector.load %arg6[%c1_107, %c4_108, %c0_109] : memref<2x8x128xf32, #tpu.memory_space<vmem>>, vector<1x1x64xf32>
    %260 = vector.shape_cast %259 : vector<1x1x64xf32> to vector<1x64xf32>
    %261 = vector.broadcast %260 : vector<1x64xf32> to vector<16x64xf32>
    %262 = arith.addf %258, %261 : vector<16x64xf32>
    %cst_110 = arith.constant 5.000000e-01 : f32
    %263 = vector.broadcast %cst_110 : f32 to vector<16x64xf32>
    %264 = arith.mulf %263, %262 : vector<16x64xf32>
    %cst_111 = arith.constant 4.471500e-02 : f32
    %265 = vector.broadcast %cst_111 : f32 to vector<16x64xf32>
    %266 = arith.mulf %265, %262 : vector<16x64xf32>
    %267 = arith.mulf %266, %262 : vector<16x64xf32>
    %268 = arith.mulf %267, %262 : vector<16x64xf32>
    %269 = arith.addf %262, %268 : vector<16x64xf32>
    %cst_112 = arith.constant 0.797884583 : f32
    %270 = vector.broadcast %cst_112 : f32 to vector<16x64xf32>
    %271 = arith.mulf %270, %269 : vector<16x64xf32>
    %272 = math.tanh %271 : vector<16x64xf32>
    %cst_113 = arith.constant 1.000000e+00 : f32
    %273 = vector.broadcast %cst_113 : f32 to vector<16x64xf32>
    %274 = arith.addf %273, %272 : vector<16x64xf32>
    %275 = arith.mulf %264, %274 : vector<16x64xf32>
    %c1_114 = arith.constant 1 : index
    %c32_115 = arith.constant 32 : index
    %c0_116 = arith.constant 0 : index
    %276 = vector.load %arg4[%c1_114, %c32_115, %c0_116] : memref<2x96x32xf32, #tpu.memory_space<vmem>>, vector<1x64x32xf32>
    %277 = vector.shape_cast %276 : vector<1x64x32xf32> to vector<64x32xf32>
    %cst_117 = arith.constant dense<0.000000e+00> : vector<16x32xf32>
    %278 = tpu.matmul %275, %277, %cst_117 {dimension_numbers = #tpu.dot_dimension_numbers<[1], [0], [0], [1], [0, 0, 1, 1], [], []>} : vector<16x64xf32>, vector<64x32xf32>, vector<16x32xf32> -> vector<16x32xf32>
    %c1_118 = arith.constant 1 : index
    %c5_119 = arith.constant 5 : index
    %c0_120 = arith.constant 0 : index
    %279 = vector.load %arg6[%c1_118, %c5_119, %c0_120] : memref<2x8x128xf32, #tpu.memory_space<vmem>>, vector<1x1x32xf32>
    %280 = vector.shape_cast %279 : vector<1x1x32xf32> to vector<1x32xf32>
    %281 = vector.broadcast %280 : vector<1x32xf32> to vector<16x32xf32>
    %282 = arith.addf %278, %281 : vector<16x32xf32>
    %283 = arith.addf %255, %282 : vector<16x32xf32>
    %c1_121 = arith.constant 1 : index
    %c6_122 = arith.constant 6 : index
    %c0_123 = arith.constant 0 : index
    %284 = vector.load %arg6[%c1_121, %c6_122, %c0_123] : memref<2x8x128xf32, #tpu.memory_space<vmem>>, vector<1x1x32xf32>
    %285 = vector.shape_cast %284 : vector<1x1x32xf32> to vector<1x32xf32>
    %c1_124 = arith.constant 1 : index
    %c7_125 = arith.constant 7 : index
    %c0_126 = arith.constant 0 : index
    %286 = vector.load %arg6[%c1_124, %c7_125, %c0_126] : memref<2x8x128xf32, #tpu.memory_space<vmem>>, vector<1x1x32xf32>
    %287 = vector.shape_cast %286 : vector<1x1x32xf32> to vector<1x32xf32>
    %cst_127 = arith.constant dense<0.000000e+00> : vector<16xf32>
    %288 = vector.multi_reduction <add>, %283, %cst_127 [1] : vector<16x32xf32> to vector<16xf32>
    %289 = vector.shape_cast %288 : vector<16xf32> to vector<16x1xf32>
    %cst_128 = arith.constant 3.200000e+01 : f32
    %290 = vector.broadcast %cst_128 : f32 to vector<16x1xf32>
    %291 = arith.divf %289, %290 : vector<16x1xf32>
    %292 = vector.broadcast %291 : vector<16x1xf32> to vector<16x32xf32>
    %293 = arith.subf %283, %292 : vector<16x32xf32>
    %294 = arith.mulf %293, %293 : vector<16x32xf32>
    %cst_129 = arith.constant dense<0.000000e+00> : vector<16xf32>
    %295 = vector.multi_reduction <add>, %294, %cst_129 [1] : vector<16x32xf32> to vector<16xf32>
    %296 = vector.shape_cast %295 : vector<16xf32> to vector<16x1xf32>
    %cst_130 = arith.constant 3.200000e+01 : f32
    %297 = vector.broadcast %cst_130 : f32 to vector<16x1xf32>
    %298 = arith.divf %296, %297 : vector<16x1xf32>
    %299 = vector.broadcast %291 : vector<16x1xf32> to vector<16x32xf32>
    %300 = arith.subf %283, %299 : vector<16x32xf32>
    %cst_131 = arith.constant 9.99999996E-13 : f32
    %301 = vector.broadcast %cst_131 : f32 to vector<16x1xf32>
    %302 = arith.addf %298, %301 : vector<16x1xf32>
    %303 = math.rsqrt %302 : vector<16x1xf32>
    %304 = vector.broadcast %303 : vector<16x1xf32> to vector<16x32xf32>
    %305 = arith.mulf %300, %304 : vector<16x32xf32>
    %306 = vector.broadcast %285 : vector<1x32xf32> to vector<16x32xf32>
    %307 = arith.mulf %305, %306 : vector<16x32xf32>
    %308 = vector.broadcast %287 : vector<1x32xf32> to vector<16x32xf32>
    %309 = arith.addf %307, %308 : vector<16x32xf32>
    %310 = vector.extract_strided_slice %309 {offsets = [0, 0], sizes = [1, 32], strides = [1, 1]} : vector<16x32xf32> to vector<1x32xf32>
    %311 = vector.extract_strided_slice %309 {offsets = [8, 0], sizes = [1, 32], strides = [1, 1]} : vector<16x32xf32> to vector<1x32xf32>
    %312 = tpu.concatenate %310, %311 in 0 : vector<1x32xf32>, vector<1x32xf32> -> vector<2x32xf32>
    %c0_132 = arith.constant 0 : index
    %c0_133 = arith.constant 0 : index
    %313 = vector.load %arg7[%c0_132, %c0_133] : memref<32x128xf32, #tpu.memory_space<vmem>>, vector<32x128xf32>
    %cst_134 = arith.constant dense<0.000000e+00> : vector<2x128xf32>
    %314 = tpu.matmul %312, %313, %cst_134 {dimension_numbers = #tpu.dot_dimension_numbers<[1], [0], [0], [1], [0, 0, 1, 1], [], []>} : vector<2x32xf32>, vector<32x128xf32>, vector<2x128xf32> -> vector<2x128xf32>
    %c0_135 = arith.constant 0 : index
    %c0_136 = arith.constant 0 : index
    %315 = vector.load %arg8[%c0_135, %c0_136] : memref<1x128xf32, #tpu.memory_space<vmem>>, vector<1x128xf32>
    %316 = vector.broadcast %315 : vector<1x128xf32> to vector<2x128xf32>
    %317 = arith.addf %314, %316 : vector<2x128xf32>
    %cst_137 = arith.constant dense<0xFF800000> : vector<2xf32>
    %318 = vector.multi_reduction <maximumf>, %317, %cst_137 [1] : vector<2x128xf32> to vector<2xf32>
    %319 = vector.shape_cast %318 : vector<2xf32> to vector<2x1xf32>
    %320 = vector.broadcast %319 : vector<2x1xf32> to vector<2x128xf32>
    %321 = arith.subf %317, %320 : vector<2x128xf32>
    %322 = math.exp %321 : vector<2x128xf32>
    %cst_138 = arith.constant dense<0.000000e+00> : vector<2xf32>
    %323 = vector.multi_reduction <add>, %322, %cst_138 [1] : vector<2x128xf32> to vector<2xf32>
    %324 = vector.shape_cast %323 : vector<2xf32> to vector<2x1xf32>
    %325 = tpu.reciprocal %324 : vector<2x1xf32> -> vector<2x1xf32>
    %326 = vector.broadcast %325 : vector<2x1xf32> to vector<2x128xf32>
    %327 = arith.mulf %322, %326 : vector<2x128xf32>
    %cst_139 = arith.constant 0.000000e+00 : f32
    %328 = vector.broadcast %cst_139 : f32 to vector<6x128xf32>
    %329 = tpu.concatenate %327, %328 in 0 : vector<2x128xf32>, vector<6x128xf32> -> vector<8x128xf32>
    %c0_140 = arith.constant 0 : index
    %c0_141 = arith.constant 0 : index
    %330 = vector.load %arg9[%c0_140, %c0_141] : memref<8x128xf32, #tpu.memory_space<vmem>>, vector<8x128xf32>
    tpu.vector_store %arg9[%c0_140, %c0_141], %329 {strides = array<i32>} : memref<8x128xf32, #tpu.memory_space<vmem>>, vector<8x128xf32>,
    return
  }
}

</mosaic_0001>

<llo_original>
// kernel: tpu_custom_call.1
$region0: #{tpu_custom_call.1}
  #allocation0 [shape = 'u32[]', space=smem, size = 0x4, offset = 0x4, fixed_abs, tag = 'smem constant byte address 0x4 - core index']
  #allocation1 [shape = 'u32[72,128]{1,0:T(1,128)}', space=vmem, size = 0x9000, scoped, tag = 'internal scratch']
  %s0 = inlined_call_operand.vmem [shape: f32[16,32], index: 0, kind: input, shape index: {}]
  %s1 = inlined_call_operand.vmem [shape: f32[2,1,8], index: 1, kind: input, shape index: {}]
  %s2 = inlined_call_operand.vmem [shape: f32[2,32], index: 2, kind: input, shape index: {}]
  %s3 = inlined_call_operand.vmem [shape: f32[2,32,96], index: 3, kind: input, shape index: {}]
  %s4 = inlined_call_operand.vmem [shape: f32[2,96,32], index: 4, kind: input, shape index: {}]
  %s5 = inlined_call_operand.vmem [shape: f32[2,32,64], index: 5, kind: input, shape index: {}]
  %s6 = inlined_call_operand.vmem [shape: f32[2,8,128], index: 6, kind: input, shape index: {}]
  %s7 = inlined_call_operand.vmem [shape: f32[32,128], index: 7, kind: input, shape index: {}]
  %s8 = inlined_call_operand.vmem [shape: f32[1,128], index: 8, kind: input, shape index: {}]
  %s9 = inlined_call_operand.hbm [shape: f32[8,128], index: 9, kind: output, shape index: {}]
  %s10 = sld [smem:[#allocation0]]
  $region46: #{tpu_custom_call.1} parent=0
    _
  %s12 = ssub.s32 1, %s10
  %s13 = scalar_select 0, %s12, %s10
  $region1: #{tpu_custom_call.1} parent=0
    #allocation2 [shape = 'u8[4096]{0}', space=vmem, size = 0x1000, scoped, tag = 'output window, operand 0, single buffered']
    #allocation3 [shape = 's32[1]{0}', space=sflag, size = 0x4, scoped, tag = 'scoped memory for tpu_custom_call.1']
    %14 = vsyncpa [#allocation3], 0
    // Predicated region
    $region2: #{tpu_custom_call.1} parent=1 // pred_check
      _
    $region3: #{tpu_custom_call.1} parent=1 // pred_check_branch
      %16 = sbr.rel (0) target = $region5
    $region4: #{tpu_custom_call.1} parent=1 // pred_region
      _
    $region5: #{tpu_custom_call.1} parent=1 // pred_fallthru
      _
    // Predicated region
    $region6: #{tpu_custom_call.1} parent=1 // pred_check
      _
    $region7: #{tpu_custom_call.1} parent=1 // pred_check_branch
      %18 = sbr.rel (0) target = $region9
    $region8: #{tpu_custom_call.1} parent=1 // pred_region
      _
    $region9: #{tpu_custom_call.1} parent=1 // pred_fallthru
      _
    // Predicated region
    $region10: #{tpu_custom_call.1} parent=1 // pred_check
      _
    $region11: #{tpu_custom_call.1} parent=1 // pred_check_branch
      %20 = sbr.rel (0) target = $region13
    $region12: #{tpu_custom_call.1} parent=1 // pred_region
      _
    $region13: #{tpu_custom_call.1} parent=1 // pred_fallthru
      _
    // Predicated region
    $region14: #{tpu_custom_call.1} parent=1 // pred_check
      _
    $region15: #{tpu_custom_call.1} parent=1 // pred_check_branch
      %22 = sbr.rel (0) target = $region17
    $region16: #{tpu_custom_call.1} parent=1 // pred_region
      _
    $region17: #{tpu_custom_call.1} parent=1 // pred_fallthru
      _
    // Predicated region
    $region18: #{tpu_custom_call.1} parent=1 // pred_check
      _
    $region19: #{tpu_custom_call.1} parent=1 // pred_check_branch
      %24 = sbr.rel (0) target = $region21
    $region20: #{tpu_custom_call.1} parent=1 // pred_region
      _
    $region21: #{tpu_custom_call.1} parent=1 // pred_fallthru
      _
    // Predicated region
    $region22: #{tpu_custom_call.1} parent=1 // pred_check
      _
    $region23: #{tpu_custom_call.1} parent=1 // pred_check_branch
      %26 = sbr.rel (0) target = $region25
    $region24: #{tpu_custom_call.1} parent=1 // pred_region
      _
    $region25: #{tpu_custom_call.1} parent=1 // pred_fallthru
      _
    // Predicated region
    $region26: #{tpu_custom_call.1} parent=1 // pred_check
      _
    $region27: #{tpu_custom_call.1} parent=1 // pred_check_branch
      %28 = sbr.rel (0) target = $region29
    $region28: #{tpu_custom_call.1} parent=1 // pred_region
      _
    $region29: #{tpu_custom_call.1} parent=1 // pred_fallthru
      _
    // Predicated region
    $region30: #{tpu_custom_call.1} parent=1 // pred_check
      _
    $region31: #{tpu_custom_call.1} parent=1 // pred_check_branch
      %30 = sbr.rel (0) target = $region33
    $region32: #{tpu_custom_call.1} parent=1 // pred_region
      _
    $region33: #{tpu_custom_call.1} parent=1 // pred_fallthru
      _
    // Predicated region
    $region34: #{tpu_custom_call.1} parent=1 // pred_check
      _
    $region35: #{tpu_custom_call.1} parent=1 // pred_check_branch
      %32 = sbr.rel (0) target = $region37
    $region36: #{tpu_custom_call.1} parent=1 // pred_region
      _
    $region37: #{tpu_custom_call.1} parent=1 // pred_fallthru
      _
    %v33 = vld [vmem:[%s0] sm:$0xff]
    %v34 = vld [vmem:[%s0 + $0x8] sm:$0xff]
    %v35 = vld [vmem:[%s2] sm:$0x1]
    %v36 = vld [vmem:[%s2 + $0x1] sm:$0x1]
    %vm37 = vcmask 261120
    %v38 = vsel %vm37, %v33, 0.0
    %39 = vadd.xlane.f32.xlu0 %v38
    %v40 = vpop.xlane.xlu0 %39
    %v41 = vsel %vm37, %v34, 0.0
    %42 = vadd.xlane.f32.xlu0 %v41
    %v43 = vpop.xlane.xlu0 %42
    %v44 = vrcp.pop 32.0
    %v45 = vmul.f32 32.0, %v44
    %v46 = vsub.f32 1.0, %v45
    %v47 = vmul.f32 %v44, %v46
    %v48 = vadd.f32 %v44, %v47
    %vm49 = vweird.f32 %v44
    %v50 = vsel %vm49, %v44, %v48
    %v51 = vmul.f32 %v40, %v50
    %v52 = vmul.f32 %v43, %v50
    %v53 = vsub.f32 %v33, %v51
    %v54 = vsub.f32 %v34, %v52
    %v55 = vmul.f32 %v53, %v53
    %v56 = vmul.f32 %v54, %v54
    %v57 = vsel %vm37, %v55, 0.0
    %58 = vadd.xlane.f32.xlu0 %v57
    %v59 = vpop.xlane.xlu0 %58
    %v60 = vsel %vm37, %v56, 0.0
    %61 = vadd.xlane.f32.xlu0 %v60
    %v62 = vpop.xlane.xlu0 %61
    %v63 = vmul.f32 %v59, %v50
    %v64 = vmul.f32 %v62, %v50
    %v65 = vadd.f32 %v63, 1e-12
    %v66 = vadd.f32 %v64, 1e-12
    %v67 = vrsqrt.pop %v65
    %v68 = vmul.f32 %v67, %v65
    %v69 = vmul.f32 %v68, %v67
    %v70 = vmul.f32 0.5, %v69
    %v71 = vsub.f32 1.5, %v70
    %v72 = vmul.f32 %v67, %v71
    %vm73 = vweird.f32 %v65
    %vm74 = vweird.f32 %v67
    %vm75 = vmor %vm73, %vm74
    %v76 = vsel %vm75, %v67, %v72
    %v77 = vrsqrt.pop %v66
    %v78 = vmul.f32 %v77, %v66
    %v79 = vmul.f32 %v78, %v77
    %v80 = vmul.f32 0.5, %v79
    %v81 = vsub.f32 1.5, %v80
    %v82 = vmul.f32 %v77, %v81
    %vm83 = vweird.f32 %v66
    %vm84 = vweird.f32 %v77
    %vm85 = vmor %vm83, %vm84
    %v86 = vsel %vm85, %v77, %v82
    %v87 = vmul.f32 %v53, %v76
    %v88 = vmul.f32 %v54, %v86
    %v89 = vperm.slane %v35, 0
    %v90 = vmul.f32 %v87, %v89
    %v91 = vmul.f32 %v88, %v89
    %v92 = vperm.slane %v36, 0
    %v93 = vadd.f32 %v90, %v92
    %v94 = vadd.f32 %v91, %v92
    %v95 = vld [vmem:[%s1] sm:$0x1]
    %v96 = vld [vmem:[%s1 + $0x1] sm:$0x1]
    %v97 = vld [vmem:[%s3] sm:$0xff]
    %v98 = vld [vmem:[%s3 + $0x8] sm:$0xff]
    %v99 = vld [vmem:[%s3 + $0x10] sm:$0xff]
    %v100 = vld [vmem:[%s3 + $0x18] sm:$0xff]
    %v101 = vld [vmem:[%s6] sm:$0x1]
    %v102 = vperm.slane %v101, 0
    %v104 = vsel %vm37, %v93, 0
    %v107 = vsel %vm37, %v94, 0
    %109 = vmatpush.msra.mxu0 0.0
    %110 = vmatpush.msra.mxu0 0.0
    %111 = vmatpush.msra.mxu0 0.0
    %112 = vmatpush.msra.mxu0 0.0
    %113 = vmatpush.msra.mxu0 0.0
    %114 = vmatpush.msra.mxu0 0.0
    %115 = vmatpush.msra.mxu0 0.0
    %116 = vmatpush.msra.mxu0 0.0
    %117 = vmatpush.msra.mxu0 0.0
    %118 = vmatpush.msra.mxu0 0.0
    %119 = vmatpush.msra.mxu0 0.0
    %120 = vmatpush.msra.mxu0 0.0
    %121 = vmatpush.msra.mxu0 %v100
    %122 = vmatpush.msra.mxu0 %v99
    %123 = vmatpush.msra.mxu0 %v98
    %124 = vmatpush.msra.mxu0 %v97
    %125 = vmatmul.f32.gmra.mxu0 %v104
    %v126 = vpop.f32.mrf.mxu0
    %v127 = vadd.f32 %v102, %v126
    %128 = vmatmul.f32.gmra.mxu0 %v107
    %v129 = vpop.f32.mrf.mxu0
    %v130 = vadd.f32 %v102, %v129
    %131 = vdwg.mxu0
    %133 = vrot.lane.b32.xlu0 %v127, 96
    %v134 = vpop.permute.xlu0 %133
    %vm135 = vcmask 130048
    %v136 = vsel %vm135, %v127, 0
    %v138 = vsel %vm135, %v134, 0
    %140 = vmatpush.xpose.msra.mxu0 0.0
    %141 = vmatpush.xpose.msra.mxu0 0.0
    %142 = vmatpush.xpose.msra.mxu0 0.0
    %143 = vmatpush.xpose.msra.mxu0 0.0
    %144 = vmatpush.xpose.msra.mxu0 0.0
    %145 = vmatpush.xpose.msra.mxu0 0.0
    %146 = vmatpush.xpose.msra.mxu0 0.0
    %147 = vmatpush.xpose.msra.mxu0 0.0
    %148 = vmatpush.xpose.msra.mxu0 0.0
    %149 = vmatpush.xpose.msra.mxu0 0.0
    %150 = vmatpush.xpose.msra.mxu0 0.0
    %151 = vmatpush.xpose.msra.mxu0 0.0
    %152 = vmatpush.xpose.msra.mxu0 0.0
    %153 = vmatpush.xpose.msra.mxu0 0.0
    %154 = vmatpush.xpose.msra.mxu0 0.0
    %155 = vmatpush.xpose.msra.mxu0 %v138
    %156 = vmatmul.f32.gmra.mxu0 %v136
    %v157 = vpop.f32.mrf.mxu0
    %v158 = vadd.f32 0.0, %v157
    %159 = vdwg.mxu0
    %161 = vrot.lane.b32.xlu0 %v130, 96
    %v162 = vpop.permute.xlu0 %161
    %v163 = vsel %vm135, %v130, 0
    %v165 = vsel %vm135, %v162, 0
    %167 = vmatpush.xpose.msra.mxu0 0.0
    %168 = vmatpush.xpose.msra.mxu0 0.0
    %169 = vmatpush.xpose.msra.mxu0 0.0
    %170 = vmatpush.xpose.msra.mxu0 0.0
    %171 = vmatpush.xpose.msra.mxu0 0.0
    %172 = vmatpush.xpose.msra.mxu0 0.0
    %173 = vmatpush.xpose.msra.mxu0 0.0
    %174 = vmatpush.xpose.msra.mxu0 0.0
    %175 = vmatpush.xpose.msra.mxu0 0.0
    %176 = vmatpush.xpose.msra.mxu0 0.0
    %177 = vmatpush.xpose.msra.mxu0 0.0
    %178 = vmatpush.xpose.msra.mxu0 0.0
    %179 = vmatpush.xpose.msra.mxu0 0.0
    %180 = vmatpush.xpose.msra.mxu0 0.0
    %181 = vmatpush.xpose.msra.mxu0 0.0
    %182 = vmatpush.xpose.msra.mxu0 %v165
    %183 = vmatmul.f32.gmra.mxu0 %v163
    %v184 = vpop.f32.mrf.mxu0
    %v185 = vadd.f32 0.0, %v184
    %186 = vdwg.mxu0
    %v187 = vmul.f32 %v158, 0.25
    %v188 = vmul.f32 %v185, 0.25
    %v191 = vperm.slane %v95, 0
    %v192 = vperm.slane %v96, 0
    %v195 = vadd.f32 %v187, %v191
    %v196 = vadd.f32 %v188, %v192
    %vm197 = vcmask 64512
    %v198 = vsel %vm197, %v195, -inf
    %199 = vmax.xlane.f32.xlu0 %v198
    %v200 = vpop.xlane.xlu0 %199
    %v201 = vsel %vm197, %v196, -inf
    %202 = vmax.xlane.f32.xlu0 %v201
    %v203 = vpop.xlane.xlu0 %202
    %v204 = vsub.f32 %v195, %v200
    %v205 = vsub.f32 %v196, %v203
    %v206 = vmul.f32 %v204, 1.442695
    %v207 = vpow.pop %v206
    %v208 = vmul.f32 %v205, 1.442695
    %v209 = vpow.pop %v208
    %v210 = vsel %vm197, %v207, 0.0
    %211 = vadd.xlane.f32.xlu0 %v210
    %v212 = vpop.xlane.xlu0 %211
    %v213 = vsel %vm197, %v209, 0.0
    %214 = vadd.xlane.f32.xlu0 %v213
    %v215 = vpop.xlane.xlu0 %214
    %v216 = vrcp.pop %v212
    %v217 = vmul.f32 %v212, %v216
    %v218 = vsub.f32 1.0, %v217
    %v219 = vmul.f32 %v216, %v218
    %v220 = vadd.f32 %v216, %v219
    %vm221 = vweird.f32 %v212
    %vm222 = vweird.f32 %v216
    %vm223 = vmor %vm221, %vm222
    %v224 = vsel %vm223, %v216, %v220
    %v225 = vand.u32 2147483647, %v212
    %vm226 = vcmp.eq.f32.partialorder %v225, 8.507059e+37
    %v227 = vand.u32 %v212, 2147483648
    %v228 = vor.u32 1.1754944e-38, %v227
    %v229 = vsel %vm226, %v228, %v224
    %v230 = vrcp.pop %v215
    %v231 = vmul.f32 %v215, %v230
    %v232 = vsub.f32 1.0, %v231
    %v233 = vmul.f32 %v230, %v232
    %v234 = vadd.f32 %v230, %v233
    %vm235 = vweird.f32 %v215
    %vm236 = vweird.f32 %v230
    %vm237 = vmor %vm235, %vm236
    %v238 = vsel %vm237, %v230, %v234
    %v239 = vand.u32 2147483647, %v215
    %vm240 = vcmp.eq.f32.partialorder %v239, 8.507059e+37
    %v241 = vand.u32 %v215, 2147483648
    %v242 = vor.u32 1.1754944e-38, %v241
    %v243 = vsel %vm240, %v242, %v238
    %v244 = vmul.f32 %v207, %v229
    %v245 = vmul.f32 %v209, %v243
    %246 = vrot.lane.b32.xlu0 %v127, 64
    %v247 = vpop.permute.xlu0 %246
    %v250 = vsel %vm197, %v244, 0
    %252 = vmatpush.msra.mxu0 0.0
    %253 = vmatpush.msra.mxu0 0.0
    %254 = vmatpush.msra.mxu0 0.0
    %255 = vmatpush.msra.mxu0 0.0
    %256 = vmatpush.msra.mxu0 0.0
    %257 = vmatpush.msra.mxu0 0.0
    %258 = vmatpush.msra.mxu0 0.0
    %259 = vmatpush.msra.mxu0 0.0
    %260 = vmatpush.msra.mxu0 0.0
    %261 = vmatpush.msra.mxu0 0.0
    %262 = vmatpush.msra.mxu0 0.0
    %263 = vmatpush.msra.mxu0 0.0
    %264 = vmatpush.msra.mxu0 0.0
    %265 = vmatpush.msra.mxu0 0.0
    %266 = vmatpush.msra.mxu0 0.0
    %267 = vmatpush.msra.mxu0 %v247
    %268 = vmatmul.f32.gmra.mxu0 %v250
    %v269 = vpop.f32.mrf.mxu0
    %v270 = vadd.f32 0.0, %v269
    %271 = vdwg.mxu0
    %272 = vrot.lane.b32.xlu0 %v130, 64
    %v273 = vpop.permute.xlu0 %272
    %v276 = vsel %vm197, %v245, 0
    %278 = vmatpush.msra.mxu0 0.0
    %279 = vmatpush.msra.mxu0 0.0
    %280 = vmatpush.msra.mxu0 0.0
    %281 = vmatpush.msra.mxu0 0.0
    %282 = vmatpush.msra.mxu0 0.0
    %283 = vmatpush.msra.mxu0 0.0
    %284 = vmatpush.msra.mxu0 0.0
    %285 = vmatpush.msra.mxu0 0.0
    %286 = vmatpush.msra.mxu0 0.0
    %287 = vmatpush.msra.mxu0 0.0
    %288 = vmatpush.msra.mxu0 0.0
    %289 = vmatpush.msra.mxu0 0.0
    %290 = vmatpush.msra.mxu0 0.0
    %291 = vmatpush.msra.mxu0 0.0
    %292 = vmatpush.msra.mxu0 0.0
    %293 = vmatpush.msra.mxu0 %v273
    %294 = vmatmul.f32.gmra.mxu0 %v276
    %v295 = vpop.f32.mrf.mxu0
    %v296 = vadd.f32 0.0, %v295
    %297 = vdwg.mxu0
    %298 = vrot.lane.b32.xlu0 %v127, 112
    %v299 = vpop.permute.xlu0 %298
    %300 = vrot.lane.b32.xlu0 %v127, 80
    %v301 = vpop.permute.xlu0 %300
    %v302 = vsel %vm135, %v299, 0
    %v304 = vsel %vm135, %v301, 0
    %306 = vmatpush.xpose.msra.mxu0 0.0
    %307 = vmatpush.xpose.msra.mxu0 0.0
    %308 = vmatpush.xpose.msra.mxu0 0.0
    %309 = vmatpush.xpose.msra.mxu0 0.0
    %310 = vmatpush.xpose.msra.mxu0 0.0
    %311 = vmatpush.xpose.msra.mxu0 0.0
    %312 = vmatpush.xpose.msra.mxu0 0.0
    %313 = vmatpush.xpose.msra.mxu0 0.0
    %314 = vmatpush.xpose.msra.mxu0 0.0
    %315 = vmatpush.xpose.msra.mxu0 0.0
    %316 = vmatpush.xpose.msra.mxu0 0.0
    %317 = vmatpush.xpose.msra.mxu0 0.0
    %318 = vmatpush.xpose.msra.mxu0 0.0
    %319 = vmatpush.xpose.msra.mxu0 0.0
    %320 = vmatpush.xpose.msra.mxu0 0.0
    %321 = vmatpush.xpose.msra.mxu0 %v304
    %322 = vmatmul.f32.gmra.mxu0 %v302
    %v323 = vpop.f32.mrf.mxu0
    %v324 = vadd.f32 0.0, %v323
    %325 = vdwg.mxu0
    %326 = vrot.lane.b32.xlu0 %v130, 112
    %v327 = vpop.permute.xlu0 %326
    %328 = vrot.lane.b32.xlu0 %v130, 80
    %v329 = vpop.permute.xlu0 %328
    %v330 = vsel %vm135, %v327, 0
    %v332 = vsel %vm135, %v329, 0
    %334 = vmatpush.xpose.msra.mxu0 0.0
    %335 = vmatpush.xpose.msra.mxu0 0.0
    %336 = vmatpush.xpose.msra.mxu0 0.0
    %337 = vmatpush.xpose.msra.mxu0 0.0
    %338 = vmatpush.xpose.msra.mxu0 0.0
    %339 = vmatpush.xpose.msra.mxu0 0.0
    %340 = vmatpush.xpose.msra.mxu0 0.0
    %341 = vmatpush.xpose.msra.mxu0 0.0
    %342 = vmatpush.xpose.msra.mxu0 0.0
    %343 = vmatpush.xpose.msra.mxu0 0.0
    %344 = vmatpush.xpose.msra.mxu0 0.0
    %345 = vmatpush.xpose.msra.mxu0 0.0
    %346 = vmatpush.xpose.msra.mxu0 0.0
    %347 = vmatpush.xpose.msra.mxu0 0.0
    %348 = vmatpush.xpose.msra.mxu0 0.0
    %349 = vmatpush.xpose.msra.mxu0 %v332
    %350 = vmatmul.f32.gmra.mxu0 %v330
    %v351 = vpop.f32.mrf.mxu0
    %v352 = vadd.f32 0.0, %v351
    %353 = vdwg.mxu0
    %v354 = vmul.f32 %v324, 0.25
    %v355 = vmul.f32 %v352, 0.25
    %v356 = vadd.f32 %v354, %v191
    %v357 = vadd.f32 %v355, %v192
    %v358 = vsel %vm197, %v356, -inf
    %359 = vmax.xlane.f32.xlu0 %v358
    %v360 = vpop.xlane.xlu0 %359
    %v361 = vsel %vm197, %v357, -inf
    %362 = vmax.xlane.f32.xlu0 %v361
    %v363 = vpop.xlane.xlu0 %362
    %v364 = vsub.f32 %v356, %v360
    %v365 = vsub.f32 %v357, %v363
    %v366 = vmul.f32 %v364, 1.442695
    %v367 = vpow.pop %v366
    %v368 = vmul.f32 %v365, 1.442695
    %v369 = vpow.pop %v368
    %v370 = vsel %vm197, %v367, 0.0
    %371 = vadd.xlane.f32.xlu0 %v370
    %v372 = vpop.xlane.xlu0 %371
    %v373 = vsel %vm197, %v369, 0.0
    %374 = vadd.xlane.f32.xlu0 %v373
    %v375 = vpop.xlane.xlu0 %374
    %v376 = vrcp.pop %v372
    %v377 = vmul.f32 %v372, %v376
    %v378 = vsub.f32 1.0, %v377
    %v379 = vmul.f32 %v376, %v378
    %v380 = vadd.f32 %v376, %v379
    %vm381 = vweird.f32 %v372
    %vm382 = vweird.f32 %v376
    %vm383 = vmor %vm381, %vm382
    %v384 = vsel %vm383, %v376, %v380
    %v385 = vand.u32 2147483647, %v372
    %vm386 = vcmp.eq.f32.partialorder %v385, 8.507059e+37
    %v387 = vand.u32 %v372, 2147483648
    %v388 = vor.u32 1.1754944e-38, %v387
    %v389 = vsel %vm386, %v388, %v384
    %v390 = vrcp.pop %v375
    %v391 = vmul.f32 %v375, %v390
    %v392 = vsub.f32 1.0, %v391
    %v393 = vmul.f32 %v390, %v392
    %v394 = vadd.f32 %v390, %v393
    %vm395 = vweird.f32 %v375
    %vm396 = vweird.f32 %v390
    %vm397 = vmor %vm395, %vm396
    %v398 = vsel %vm397, %v390, %v394
    %v399 = vand.u32 2147483647, %v375
    %vm400 = vcmp.eq.f32.partialorder %v399, 8.507059e+37
    %v401 = vand.u32 %v375, 2147483648
    %v402 = vor.u32 1.1754944e-38, %v401
    %v403 = vsel %vm400, %v402, %v398
    %v404 = vmul.f32 %v367, %v389
    %v405 = vmul.f32 %v369, %v403
    %406 = vrot.lane.b32.xlu0 %v127, 48
    %v407 = vpop.permute.xlu0 %406
    %v410 = vsel %vm197, %v404, 0
    %412 = vmatpush.msra.mxu0 0.0
    %413 = vmatpush.msra.mxu0 0.0
    %414 = vmatpush.msra.mxu0 0.0
    %415 = vmatpush.msra.mxu0 0.0
    %416 = vmatpush.msra.mxu0 0.0
    %417 = vmatpush.msra.mxu0 0.0
    %418 = vmatpush.msra.mxu0 0.0
    %419 = vmatpush.msra.mxu0 0.0
    %420 = vmatpush.msra.mxu0 0.0
    %421 = vmatpush.msra.mxu0 0.0
    %422 = vmatpush.msra.mxu0 0.0
    %423 = vmatpush.msra.mxu0 0.0
    %424 = vmatpush.msra.mxu0 0.0
    %425 = vmatpush.msra.mxu0 0.0
    %426 = vmatpush.msra.mxu0 0.0
    %427 = vmatpush.msra.mxu0 %v407
    %428 = vmatmul.f32.gmra.mxu0 %v410
    %v429 = vpop.f32.mrf.mxu0
    %v430 = vadd.f32 0.0, %v429
    %431 = vdwg.mxu0
    %432 = vrot.lane.b32.xlu0 %v130, 48
    %v433 = vpop.permute.xlu0 %432
    %v436 = vsel %vm197, %v405, 0
    %438 = vmatpush.msra.mxu0 0.0
    %439 = vmatpush.msra.mxu0 0.0
    %440 = vmatpush.msra.mxu0 0.0
    %441 = vmatpush.msra.mxu0 0.0
    %442 = vmatpush.msra.mxu0 0.0
    %443 = vmatpush.msra.mxu0 0.0
    %444 = vmatpush.msra.mxu0 0.0
    %445 = vmatpush.msra.mxu0 0.0
    %446 = vmatpush.msra.mxu0 0.0
    %447 = vmatpush.msra.mxu0 0.0
    %448 = vmatpush.msra.mxu0 0.0
    %449 = vmatpush.msra.mxu0 0.0
    %450 = vmatpush.msra.mxu0 0.0
    %451 = vmatpush.msra.mxu0 0.0
    %452 = vmatpush.msra.mxu0 0.0
    %453 = vmatpush.msra.mxu0 %v433
    %454 = vmatmul.f32.gmra.mxu0 %v436
    %v455 = vpop.f32.mrf.mxu0
    %v456 = vadd.f32 0.0, %v455
    %457 = vdwg.mxu0
    %460 = vrot.lane.b32.xlu0 %v430, 16
    %v461 = vpop.permute.xlu0 %460
    %462 = vrot.lane.b32.xlu0 %v456, 16
    %v463 = vpop.permute.xlu0 %462
    %v466 = vsel %vm135, %v270, %v461
    %v467 = vsel %vm135, %v296, %v463
    %v468 = vld [vmem:[%s4] sm:$0xff]
    %v469 = vld [vmem:[%s4 + $0x8] sm:$0xff]
    %v470 = vld [vmem:[%s4 + $0x10] sm:$0xff]
    %v471 = vld [vmem:[%s4 + $0x18] sm:$0xff]
    %v472 = vld [vmem:[%s6 + $0x1] sm:$0x1]
    %v473 = vperm.slane %v472, 0
    %v475 = vsel %vm37, %v466, 0
    %v478 = vsel %vm37, %v467, 0
    %480 = vmatpush.msra.mxu0 0.0
    %481 = vmatpush.msra.mxu0 0.0
    %482 = vmatpush.msra.mxu0 0.0
    %483 = vmatpush.msra.mxu0 0.0
    %484 = vmatpush.msra.mxu0 0.0
    %485 = vmatpush.msra.mxu0 0.0
    %486 = vmatpush.msra.mxu0 0.0
    %487 = vmatpush.msra.mxu0 0.0
    %488 = vmatpush.msra.mxu0 0.0
    %489 = vmatpush.msra.mxu0 0.0
    %490 = vmatpush.msra.mxu0 0.0
    %491 = vmatpush.msra.mxu0 0.0
    %492 = vmatpush.msra.mxu0 %v471
    %493 = vmatpush.msra.mxu0 %v470
    %494 = vmatpush.msra.mxu0 %v469
    %495 = vmatpush.msra.mxu0 %v468
    %496 = vmatmul.f32.gmra.mxu0 %v475
    %v497 = vpop.f32.mrf.mxu0
    %v498 = vadd.f32 %v473, %v497
    %499 = vmatmul.f32.gmra.mxu0 %v478
    %v500 = vpop.f32.mrf.mxu0
    %v501 = vadd.f32 %v473, %v500
    %502 = vdwg.mxu0
    %v503 = vadd.f32 %v93, %v498
    %v504 = vadd.f32 %v94, %v501
    %v505 = vld [vmem:[%s6 + $0x2] sm:$0x1]
    %v506 = vld [vmem:[%s6 + $0x3] sm:$0x1]
    %v507 = vsel %vm37, %v503, 0.0
    %508 = vadd.xlane.f32.xlu0 %v507
    %v509 = vpop.xlane.xlu0 %508
    %v510 = vsel %vm37, %v504, 0.0
    %511 = vadd.xlane.f32.xlu0 %v510
    %v512 = vpop.xlane.xlu0 %511
    %v513 = vmul.f32 %v509, %v50
    %v514 = vmul.f32 %v512, %v50
    %v515 = vsub.f32 %v503, %v513
    %v516 = vsub.f32 %v504, %v514
    %v517 = vmul.f32 %v515, %v515
    %v518 = vmul.f32 %v516, %v516
    %v519 = vsel %vm37, %v517, 0.0
    %520 = vadd.xlane.f32.xlu0 %v519
    %v521 = vpop.xlane.xlu0 %520
    %v522 = vsel %vm37, %v518, 0.0
    %523 = vadd.xlane.f32.xlu0 %v522
    %v524 = vpop.xlane.xlu0 %523
    %v525 = vmul.f32 %v521, %v50
    %v526 = vmul.f32 %v524, %v50
    %v527 = vadd.f32 %v525, 1e-12
    %v528 = vadd.f32 %v526, 1e-12
    %v529 = vrsqrt.pop %v527
    %v530 = vmul.f32 %v529, %v527
    %v531 = vmul.f32 %v530, %v529
    %v532 = vmul.f32 0.5, %v531
    %v533 = vsub.f32 1.5, %v532
    %v534 = vmul.f32 %v529, %v533
    %vm535 = vweird.f32 %v527
    %vm536 = vweird.f32 %v529
    %vm537 = vmor %vm535, %vm536
    %v538 = vsel %vm537, %v529, %v534
    %v539 = vrsqrt.pop %v528
    %v540 = vmul.f32 %v539, %v528
    %v541 = vmul.f32 %v540, %v539
    %v542 = vmul.f32 0.5, %v541
    %v543 = vsub.f32 1.5, %v542
    %v544 = vmul.f32 %v539, %v543
    %vm545 = vweird.f32 %v528
    %vm546 = vweird.f32 %v539
    %vm547 = vmor %vm545, %vm546
    %v548 = vsel %vm547, %v539, %v544
    %v549 = vmul.f32 %v515, %v538
    %v550 = vmul.f32 %v516, %v548
    %v551 = vperm.slane %v505, 0
    %v552 = vmul.f32 %v549, %v551
    %v553 = vmul.f32 %v550, %v551
    %v554 = vperm.slane %v506, 0
    %v555 = vadd.f32 %v552, %v554
    %v556 = vadd.f32 %v553, %v554
    %v557 = vld [vmem:[%s5] sm:$0xff]
    %v558 = vld [vmem:[%s5 + $0x8] sm:$0xff]
    %v559 = vld [vmem:[%s5 + $0x10] sm:$0xff]
    %v560 = vld [vmem:[%s5 + $0x18] sm:$0xff]
    %v561 = vld [vmem:[%s6 + $0x4] sm:$0x1]
    %v562 = vperm.slane %v561, 0
    %v564 = vsel %vm37, %v555, 0
    %v567 = vsel %vm37, %v556, 0
    %569 = vmatpush.msra.mxu0 0.0
    %570 = vmatpush.msra.mxu0 0.0
    %571 = vmatpush.msra.mxu0 0.0
    %572 = vmatpush.msra.mxu0 0.0
    %573 = vmatpush.msra.mxu0 0.0
    %574 = vmatpush.msra.mxu0 0.0
    %575 = vmatpush.msra.mxu0 0.0
    %576 = vmatpush.msra.mxu0 0.0
    %577 = vmatpush.msra.mxu0 0.0
    %578 = vmatpush.msra.mxu0 0.0
    %579 = vmatpush.msra.mxu0 0.0
    %580 = vmatpush.msra.mxu0 0.0
    %581 = vmatpush.msra.mxu0 %v560
    %582 = vmatpush.msra.mxu0 %v559
    %583 = vmatpush.msra.mxu0 %v558
    %584 = vmatpush.msra.mxu0 %v557
    %585 = vmatmul.f32.gmra.mxu0 %v564
    %v586 = vpop.f32.mrf.mxu0
    %v587 = vadd.f32 %v562, %v586
    %588 = vmatmul.f32.gmra.mxu0 %v567
    %v589 = vpop.f32.mrf.mxu0
    %v590 = vadd.f32 %v562, %v589
    %591 = vdwg.mxu0
    %v592 = vmul.f32 %v587, 0.5
    %v593 = vmul.f32 %v590, 0.5
    %v594 = vmul.f32 %v587, 0.044715
    %v595 = vmul.f32 %v590, 0.044715
    %v596 = vmul.f32 %v594, %v587
    %v597 = vmul.f32 %v595, %v590
    %v598 = vmul.f32 %v596, %v587
    %v599 = vmul.f32 %v597, %v590
    %v600 = vadd.f32 %v587, %v598
    %v601 = vadd.f32 %v590, %v599
    %v602 = vmul.f32 %v600, 0.7978846
    %v603 = vmul.f32 %v601, 0.7978846
    %v604 = vtanh.pop %v602
    %v605 = vtanh.pop %v603
    %v606 = vadd.f32 %v604, 1.0
    %v607 = vadd.f32 %v605, 1.0
    %v608 = vmul.f32 %v592, %v606
    %v609 = vmul.f32 %v593, %v607
    %v610 = vld [vmem:[%s4 + $0x20] sm:$0xff]
    %v611 = vld [vmem:[%s4 + $0x28] sm:$0xff]
    %v612 = vld [vmem:[%s4 + $0x30] sm:$0xff]
    %v613 = vld [vmem:[%s4 + $0x38] sm:$0xff]
    %v614 = vld [vmem:[%s4 + $0x40] sm:$0xff]
    %v615 = vld [vmem:[%s4 + $0x48] sm:$0xff]
    %v616 = vld [vmem:[%s4 + $0x50] sm:$0xff]
    %v617 = vld [vmem:[%s4 + $0x58] sm:$0xff]
    %v618 = vld [vmem:[%s6 + $0x5] sm:$0x1]
    %v619 = vperm.slane %v618, 0
    %vm620 = vcmask 523264
    %v622 = vsel %vm620, %v608, 0
    %v625 = vsel %vm620, %v609, 0
    %627 = vmatpush.msra.mxu0 0.0
    %628 = vmatpush.msra.mxu0 0.0
    %629 = vmatpush.msra.mxu0 0.0
    %630 = vmatpush.msra.mxu0 0.0
    %631 = vmatpush.msra.mxu0 0.0
    %632 = vmatpush.msra.mxu0 0.0
    %633 = vmatpush.msra.mxu0 0.0
    %634 = vmatpush.msra.mxu0 0.0
    %635 = vmatpush.msra.mxu0 %v617
    %636 = vmatpush.msra.mxu0 %v616
    %637 = vmatpush.msra.mxu0 %v615
    %638 = vmatpush.msra.mxu0 %v614
    %639 = vmatpush.msra.mxu0 %v613
    %640 = vmatpush.msra.mxu0 %v612
    %641 = vmatpush.msra.mxu0 %v611
    %642 = vmatpush.msra.mxu0 %v610
    %643 = vmatmul.f32.gmra.mxu0 %v622
    %v644 = vpop.f32.mrf.mxu0
    %v645 = vadd.f32 %v619, %v644
    %646 = vmatmul.f32.gmra.mxu0 %v625
    %v647 = vpop.f32.mrf.mxu0
    %v648 = vadd.f32 %v619, %v647
    %649 = vdwg.mxu0
    %v650 = vadd.f32 %v555, %v645
    %v651 = vadd.f32 %v556, %v648
    %v652 = vld [vmem:[%s6 + $0x6] sm:$0x1]
    %v653 = vld [vmem:[%s6 + $0x7] sm:$0x1]
    %v654 = vsel %vm37, %v650, 0.0
    %655 = vadd.xlane.f32.xlu0 %v654
    %v656 = vpop.xlane.xlu0 %655
    %v657 = vsel %vm37, %v651, 0.0
    %658 = vadd.xlane.f32.xlu0 %v657
    %v659 = vpop.xlane.xlu0 %658
    %v660 = vmul.f32 %v656, %v50
    %v661 = vmul.f32 %v659, %v50
    %v662 = vsub.f32 %v650, %v660
    %v663 = vsub.f32 %v651, %v661
    %v664 = vmul.f32 %v662, %v662
    %v665 = vmul.f32 %v663, %v663
    %v666 = vsel %vm37, %v664, 0.0
    %667 = vadd.xlane.f32.xlu0 %v666
    %v668 = vpop.xlane.xlu0 %667
    %v669 = vsel %vm37, %v665, 0.0
    %670 = vadd.xlane.f32.xlu0 %v669
    %v671 = vpop.xlane.xlu0 %670
    %v672 = vmul.f32 %v668, %v50
    %v673 = vmul.f32 %v671, %v50
    %v674 = vadd.f32 %v672, 1e-12
    %v675 = vadd.f32 %v673, 1e-12
    %v676 = vrsqrt.pop %v674
    %v677 = vmul.f32 %v676, %v674
    %v678 = vmul.f32 %v677, %v676
    %v679 = vmul.f32 0.5, %v678
    %v680 = vsub.f32 1.5, %v679
    %v681 = vmul.f32 %v676, %v680
    %vm682 = vweird.f32 %v674
    %vm683 = vweird.f32 %v676
    %vm684 = vmor %vm682, %vm683
    %v685 = vsel %vm684, %v676, %v681
    %v686 = vrsqrt.pop %v675
    %v687 = vmul.f32 %v686, %v675
    %v688 = vmul.f32 %v687, %v686
    %v689 = vmul.f32 0.5, %v688
    %v690 = vsub.f32 1.5, %v689
    %v691 = vmul.f32 %v686, %v690
    %vm692 = vweird.f32 %v675
    %vm693 = vweird.f32 %v686
    %vm694 = vmor %vm692, %vm693
    %v695 = vsel %vm694, %v686, %v691
    %v696 = vmul.f32 %v662, %v685
    %v697 = vmul.f32 %v663, %v695
    %v698 = vperm.slane %v652, 0
    %v699 = vmul.f32 %v696, %v698
    %v700 = vmul.f32 %v697, %v698
    %v701 = vperm.slane %v653, 0
    %v702 = vadd.f32 %v699, %v701
    %v703 = vadd.f32 %v700, %v701
    %s704 = scalar_lea.vmem %s3, 32
    %v705 = vld [vmem:[%s704] sm:$0xff]
    %v706 = vld [vmem:[%s704 + $0x8] sm:$0xff]
    %v707 = vld [vmem:[%s704 + $0x10] sm:$0xff]
    %v708 = vld [vmem:[%s704 + $0x18] sm:$0xff]
    %s709 = scalar_lea.vmem %s6, 8
    %v710 = vld [vmem:[%s709] sm:$0x1]
    %v711 = vperm.slane %v710, 0
    %v713 = vsel %vm37, %v702, 0
    %v716 = vsel %vm37, %v703, 0
    %718 = vmatpush.msra.mxu0 0.0
    %719 = vmatpush.msra.mxu0 0.0
    %720 = vmatpush.msra.mxu0 0.0
    %721 = vmatpush.msra.mxu0 0.0
    %722 = vmatpush.msra.mxu0 0.0
    %723 = vmatpush.msra.mxu0 0.0
    %724 = vmatpush.msra.mxu0 0.0
    %725 = vmatpush.msra.mxu0 0.0
    %726 = vmatpush.msra.mxu0 0.0
    %727 = vmatpush.msra.mxu0 0.0
    %728 = vmatpush.msra.mxu0 0.0
    %729 = vmatpush.msra.mxu0 0.0
    %730 = vmatpush.msra.mxu0 %v708
    %731 = vmatpush.msra.mxu0 %v707
    %732 = vmatpush.msra.mxu0 %v706
    %733 = vmatpush.msra.mxu0 %v705
    %734 = vmatmul.f32.gmra.mxu0 %v713
    %v735 = vpop.f32.mrf.mxu0
    %v736 = vadd.f32 %v711, %v735
    %737 = vmatmul.f32.gmra.mxu0 %v716
    %v738 = vpop.f32.mrf.mxu0
    %v739 = vadd.f32 %v711, %v738
    %740 = vdwg.mxu0
    %742 = vrot.lane.b32.xlu0 %v736, 96
    %v743 = vpop.permute.xlu0 %742
    %v744 = vsel %vm135, %v736, 0
    %v746 = vsel %vm135, %v743, 0
    %748 = vmatpush.xpose.msra.mxu0 0.0
    %749 = vmatpush.xpose.msra.mxu0 0.0
    %750 = vmatpush.xpose.msra.mxu0 0.0
    %751 = vmatpush.xpose.msra.mxu0 0.0
    %752 = vmatpush.xpose.msra.mxu0 0.0
    %753 = vmatpush.xpose.msra.mxu0 0.0
    %754 = vmatpush.xpose.msra.mxu0 0.0
    %755 = vmatpush.xpose.msra.mxu0 0.0
    %756 = vmatpush.xpose.msra.mxu0 0.0
    %757 = vmatpush.xpose.msra.mxu0 0.0
    %758 = vmatpush.xpose.msra.mxu0 0.0
    %759 = vmatpush.xpose.msra.mxu0 0.0
    %760 = vmatpush.xpose.msra.mxu0 0.0
    %761 = vmatpush.xpose.msra.mxu0 0.0
    %762 = vmatpush.xpose.msra.mxu0 0.0
    %763 = vmatpush.xpose.msra.mxu0 %v746
    %764 = vmatmul.f32.gmra.mxu0 %v744
    %v765 = vpop.f32.mrf.mxu0
    %v766 = vadd.f32 0.0, %v765
    %767 = vdwg.mxu0
    %769 = vrot.lane.b32.xlu0 %v739, 96
    %v770 = vpop.permute.xlu0 %769
    %v771 = vsel %vm135, %v739, 0
    %v773 = vsel %vm135, %v770, 0
    %775 = vmatpush.xpose.msra.mxu0 0.0
    %776 = vmatpush.xpose.msra.mxu0 0.0
    %777 = vmatpush.xpose.msra.mxu0 0.0
    %778 = vmatpush.xpose.msra.mxu0 0.0
    %779 = vmatpush.xpose.msra.mxu0 0.0
    %780 = vmatpush.xpose.msra.mxu0 0.0
    %781 = vmatpush.xpose.msra.mxu0 0.0
    %782 = vmatpush.xpose.msra.mxu0 0.0
    %783 = vmatpush.xpose.msra.mxu0 0.0
    %784 = vmatpush.xpose.msra.mxu0 0.0
    %785 = vmatpush.xpose.msra.mxu0 0.0
    %786 = vmatpush.xpose.msra.mxu0 0.0
    %787 = vmatpush.xpose.msra.mxu0 0.0
    %788 = vmatpush.xpose.msra.mxu0 0.0
    %789 = vmatpush.xpose.msra.mxu0 0.0
    %790 = vmatpush.xpose.msra.mxu0 %v773
    %791 = vmatmul.f32.gmra.mxu0 %v771
    %v792 = vpop.f32.mrf.mxu0
    %v793 = vadd.f32 0.0, %v792
    %794 = vdwg.mxu0
    %v795 = vmul.f32 %v766, 0.25
    %v796 = vmul.f32 %v793, 0.25
    %v797 = vadd.f32 %v795, %v191
    %v798 = vadd.f32 %v796, %v192
    %v799 = vsel %vm197, %v797, -inf
    %800 = vmax.xlane.f32.xlu0 %v799
    %v801 = vpop.xlane.xlu0 %800
    %v802 = vsel %vm197, %v798, -inf
    %803 = vmax.xlane.f32.xlu0 %v802
    %v804 = vpop.xlane.xlu0 %803
    %v805 = vsub.f32 %v797, %v801
    %v806 = vsub.f32 %v798, %v804
    %v807 = vmul.f32 %v805, 1.442695
    %v808 = vpow.pop %v807
    %v809 = vmul.f32 %v806, 1.442695
    %v810 = vpow.pop %v809
    %v811 = vsel %vm197, %v808, 0.0
    %812 = vadd.xlane.f32.xlu0 %v811
    %v813 = vpop.xlane.xlu0 %812
    %v814 = vsel %vm197, %v810, 0.0
    %815 = vadd.xlane.f32.xlu0 %v814
    %v816 = vpop.xlane.xlu0 %815
    %v817 = vrcp.pop %v813
    %v818 = vmul.f32 %v813, %v817
    %v819 = vsub.f32 1.0, %v818
    %v820 = vmul.f32 %v817, %v819
    %v821 = vadd.f32 %v817, %v820
    %vm822 = vweird.f32 %v813
    %vm823 = vweird.f32 %v817
    %vm824 = vmor %vm822, %vm823
    %v825 = vsel %vm824, %v817, %v821
    %v826 = vand.u32 2147483647, %v813
    %vm827 = vcmp.eq.f32.partialorder %v826, 8.507059e+37
    %v828 = vand.u32 %v813, 2147483648
    %v829 = vor.u32 1.1754944e-38, %v828
    %v830 = vsel %vm827, %v829, %v825
    %v831 = vrcp.pop %v816
    %v832 = vmul.f32 %v816, %v831
    %v833 = vsub.f32 1.0, %v832
    %v834 = vmul.f32 %v831, %v833
    %v835 = vadd.f32 %v831, %v834
    %vm836 = vweird.f32 %v816
    %vm837 = vweird.f32 %v831
    %vm838 = vmor %vm836, %vm837
    %v839 = vsel %vm838, %v831, %v835
    %v840 = vand.u32 2147483647, %v816
    %vm841 = vcmp.eq.f32.partialorder %v840, 8.507059e+37
    %v842 = vand.u32 %v816, 2147483648
    %v843 = vor.u32 1.1754944e-38, %v842
    %v844 = vsel %vm841, %v843, %v839
    %v845 = vmul.f32 %v808, %v830
    %v846 = vmul.f32 %v810, %v844
    %847 = vrot.lane.b32.xlu0 %v736, 64
    %v848 = vpop.permute.xlu0 %847
    %v851 = vsel %vm197, %v845, 0
    %853 = vmatpush.msra.mxu0 0.0
    %854 = vmatpush.msra.mxu0 0.0
    %855 = vmatpush.msra.mxu0 0.0
    %856 = vmatpush.msra.mxu0 0.0
    %857 = vmatpush.msra.mxu0 0.0
    %858 = vmatpush.msra.mxu0 0.0
    %859 = vmatpush.msra.mxu0 0.0
    %860 = vmatpush.msra.mxu0 0.0
    %861 = vmatpush.msra.mxu0 0.0
    %862 = vmatpush.msra.mxu0 0.0
    %863 = vmatpush.msra.mxu0 0.0
    %864 = vmatpush.msra.mxu0 0.0
    %865 = vmatpush.msra.mxu0 0.0
    %866 = vmatpush.msra.mxu0 0.0
    %867 = vmatpush.msra.mxu0 0.0
    %868 = vmatpush.msra.mxu0 %v848
    %869 = vmatmul.f32.gmra.mxu0 %v851
    %v870 = vpop.f32.mrf.mxu0
    %v871 = vadd.f32 0.0, %v870
    %872 = vdwg.mxu0
    %873 = vrot.lane.b32.xlu0 %v739, 64
    %v874 = vpop.permute.xlu0 %873
    %v877 = vsel %vm197, %v846, 0
    %879 = vmatpush.msra.mxu0 0.0
    %880 = vmatpush.msra.mxu0 0.0
    %881 = vmatpush.msra.mxu0 0.0
    %882 = vmatpush.msra.mxu0 0.0
    %883 = vmatpush.msra.mxu0 0.0
    %884 = vmatpush.msra.mxu0 0.0
    %885 = vmatpush.msra.mxu0 0.0
    %886 = vmatpush.msra.mxu0 0.0
    %887 = vmatpush.msra.mxu0 0.0
    %888 = vmatpush.msra.mxu0 0.0
    %889 = vmatpush.msra.mxu0 0.0
    %890 = vmatpush.msra.mxu0 0.0
    %891 = vmatpush.msra.mxu0 0.0
    %892 = vmatpush.msra.mxu0 0.0
    %893 = vmatpush.msra.mxu0 0.0
    %894 = vmatpush.msra.mxu0 %v874
    %895 = vmatmul.f32.gmra.mxu0 %v877
    %v896 = vpop.f32.mrf.mxu0
    %v897 = vadd.f32 0.0, %v896
    %898 = vdwg.mxu0
    %899 = vrot.lane.b32.xlu0 %v736, 112
    %v900 = vpop.permute.xlu0 %899
    %901 = vrot.lane.b32.xlu0 %v736, 80
    %v902 = vpop.permute.xlu0 %901
    %v903 = vsel %vm135, %v900, 0
    %v905 = vsel %vm135, %v902, 0
    %907 = vmatpush.xpose.msra.mxu0 0.0
    %908 = vmatpush.xpose.msra.mxu0 0.0
    %909 = vmatpush.xpose.msra.mxu0 0.0
    %910 = vmatpush.xpose.msra.mxu0 0.0
    %911 = vmatpush.xpose.msra.mxu0 0.0
    %912 = vmatpush.xpose.msra.mxu0 0.0
    %913 = vmatpush.xpose.msra.mxu0 0.0
    %914 = vmatpush.xpose.msra.mxu0 0.0
    %915 = vmatpush.xpose.msra.mxu0 0.0
    %916 = vmatpush.xpose.msra.mxu0 0.0
    %917 = vmatpush.xpose.msra.mxu0 0.0
    %918 = vmatpush.xpose.msra.mxu0 0.0
    %919 = vmatpush.xpose.msra.mxu0 0.0
    %920 = vmatpush.xpose.msra.mxu0 0.0
    %921 = vmatpush.xpose.msra.mxu0 0.0
    %922 = vmatpush.xpose.msra.mxu0 %v905
    %923 = vmatmul.f32.gmra.mxu0 %v903
    %v924 = vpop.f32.mrf.mxu0
    %v925 = vadd.f32 0.0, %v924
    %926 = vdwg.mxu0
    %927 = vrot.lane.b32.xlu0 %v739, 112
    %v928 = vpop.permute.xlu0 %927
    %929 = vrot.lane.b32.xlu0 %v739, 80
    %v930 = vpop.permute.xlu0 %929
    %v931 = vsel %vm135, %v928, 0
    %v933 = vsel %vm135, %v930, 0
    %935 = vmatpush.xpose.msra.mxu0 0.0
    %936 = vmatpush.xpose.msra.mxu0 0.0
    %937 = vmatpush.xpose.msra.mxu0 0.0
    %938 = vmatpush.xpose.msra.mxu0 0.0
    %939 = vmatpush.xpose.msra.mxu0 0.0
    %940 = vmatpush.xpose.msra.mxu0 0.0
    %941 = vmatpush.xpose.msra.mxu0 0.0
    %942 = vmatpush.xpose.msra.mxu0 0.0
    %943 = vmatpush.xpose.msra.mxu0 0.0
    %944 = vmatpush.xpose.msra.mxu0 0.0
    %945 = vmatpush.xpose.msra.mxu0 0.0
    %946 = vmatpush.xpose.msra.mxu0 0.0
    %947 = vmatpush.xpose.msra.mxu0 0.0
    %948 = vmatpush.xpose.msra.mxu0 0.0
    %949 = vmatpush.xpose.msra.mxu0 0.0
    %950 = vmatpush.xpose.msra.mxu0 %v933
    %951 = vmatmul.f32.gmra.mxu0 %v931
    %v952 = vpop.f32.mrf.mxu0
    %v953 = vadd.f32 0.0, %v952
    %954 = vdwg.mxu0
    %v955 = vmul.f32 %v925, 0.25
    %v956 = vmul.f32 %v953, 0.25
    %v957 = vadd.f32 %v955, %v191
    %v958 = vadd.f32 %v956, %v192
    %v959 = vsel %vm197, %v957, -inf
    %960 = vmax.xlane.f32.xlu0 %v959
    %v961 = vpop.xlane.xlu0 %960
    %v962 = vsel %vm197, %v958, -inf
    %963 = vmax.xlane.f32.xlu0 %v962
    %v964 = vpop.xlane.xlu0 %963
    %v965 = vsub.f32 %v957, %v961
    %v966 = vsub.f32 %v958, %v964
    %v967 = vmul.f32 %v965, 1.442695
    %v968 = vpow.pop %v967
    %v969 = vmul.f32 %v966, 1.442695
    %v970 = vpow.pop %v969
    %v971 = vsel %vm197, %v968, 0.0
    %972 = vadd.xlane.f32.xlu0 %v971
    %v973 = vpop.xlane.xlu0 %972
    %v974 = vsel %vm197, %v970, 0.0
    %975 = vadd.xlane.f32.xlu0 %v974
    %v976 = vpop.xlane.xlu0 %975
    %v977 = vrcp.pop %v973
    %v978 = vmul.f32 %v973, %v977
    %v979 = vsub.f32 1.0, %v978
    %v980 = vmul.f32 %v977, %v979
    %v981 = vadd.f32 %v977, %v980
    %vm982 = vweird.f32 %v973
    %vm983 = vweird.f32 %v977
    %vm984 = vmor %vm982, %vm983
    %v985 = vsel %vm984, %v977, %v981
    %v986 = vand.u32 2147483647, %v973
    %vm987 = vcmp.eq.f32.partialorder %v986, 8.507059e+37
    %v988 = vand.u32 %v973, 2147483648
    %v989 = vor.u32 1.1754944e-38, %v988
    %v990 = vsel %vm987, %v989, %v985
    %v991 = vrcp.pop %v976
    %v992 = vmul.f32 %v976, %v991
    %v993 = vsub.f32 1.0, %v992
    %v994 = vmul.f32 %v991, %v993
    %v995 = vadd.f32 %v991, %v994
    %vm996 = vweird.f32 %v976
    %vm997 = vweird.f32 %v991
    %vm998 = vmor %vm996, %vm997
    %v999 = vsel %vm998, %v991, %v995
    %v1000 = vand.u32 2147483647, %v976
    %vm1001 = vcmp.eq.f32.partialorder %v1000, 8.507059e+37
    %v1002 = vand.u32 %v976, 2147483648
    %v1003 = vor.u32 1.1754944e-38, %v1002
    %v1004 = vsel %vm1001, %v1003, %v999
    %v1005 = vmul.f32 %v968, %v990
    %v1006 = vmul.f32 %v970, %v1004
    %1007 = vrot.lane.b32.xlu0 %v736, 48
    %v1008 = vpop.permute.xlu0 %1007
    %v1011 = vsel %vm197, %v1005, 0
    %1013 = vmatpush.msra.mxu0 0.0
    %1014 = vmatpush.msra.mxu0 0.0
    %1015 = vmatpush.msra.mxu0 0.0
    %1016 = vmatpush.msra.mxu0 0.0
    %1017 = vmatpush.msra.mxu0 0.0
    %1018 = vmatpush.msra.mxu0 0.0
    %1019 = vmatpush.msra.mxu0 0.0
    %1020 = vmatpush.msra.mxu0 0.0
    %1021 = vmatpush.msra.mxu0 0.0
    %1022 = vmatpush.msra.mxu0 0.0
    %1023 = vmatpush.msra.mxu0 0.0
    %1024 = vmatpush.msra.mxu0 0.0
    %1025 = vmatpush.msra.mxu0 0.0
    %1026 = vmatpush.msra.mxu0 0.0
    %1027 = vmatpush.msra.mxu0 0.0
    %1028 = vmatpush.msra.mxu0 %v1008
    %1029 = vmatmul.f32.gmra.mxu0 %v1011
    %v1030 = vpop.f32.mrf.mxu0
    %v1031 = vadd.f32 0.0, %v1030
    %1032 = vdwg.mxu0
    %1033 = vrot.lane.b32.xlu0 %v739, 48
    %v1034 = vpop.permute.xlu0 %1033
    %v1037 = vsel %vm197, %v1006, 0
    %1039 = vmatpush.msra.mxu0 0.0
    %1040 = vmatpush.msra.mxu0 0.0
    %1041 = vmatpush.msra.mxu0 0.0
    %1042 = vmatpush.msra.mxu0 0.0
    %1043 = vmatpush.msra.mxu0 0.0
    %1044 = vmatpush.msra.mxu0 0.0
    %1045 = vmatpush.msra.mxu0 0.0
    %1046 = vmatpush.msra.mxu0 0.0
    %1047 = vmatpush.msra.mxu0 0.0
    %1048 = vmatpush.msra.mxu0 0.0
    %1049 = vmatpush.msra.mxu0 0.0
    %1050 = vmatpush.msra.mxu0 0.0
    %1051 = vmatpush.msra.mxu0 0.0
    %1052 = vmatpush.msra.mxu0 0.0
    %1053 = vmatpush.msra.mxu0 0.0
    %1054 = vmatpush.msra.mxu0 %v1034
    %1055 = vmatmul.f32.gmra.mxu0 %v1037
    %v1056 = vpop.f32.mrf.mxu0
    %v1057 = vadd.f32 0.0, %v1056
    %1058 = vdwg.mxu0
    %1061 = vrot.lane.b32.xlu0 %v1031, 16
    %v1062 = vpop.permute.xlu0 %1061
    %1063 = vrot.lane.b32.xlu0 %v1057, 16
    %v1064 = vpop.permute.xlu0 %1063
    %v1067 = vsel %vm135, %v871, %v1062
    %v1068 = vsel %vm135, %v897, %v1064
    %s1069 = scalar_lea.vmem %s4, 96
    %v1070 = vld [vmem:[%s1069] sm:$0xff]
    %v1071 = vld [vmem:[%s1069 + $0x8] sm:$0xff]
    %v1072 = vld [vmem:[%s1069 + $0x10] sm:$0xff]
    %v1073 = vld [vmem:[%s1069 + $0x18] sm:$0xff]
    %v1074 = vld [vmem:[%s709 + $0x1] sm:$0x1]
    %v1075 = vperm.slane %v1074, 0
    %v1077 = vsel %vm37, %v1067, 0
    %v1080 = vsel %vm37, %v1068, 0
    %1082 = vmatpush.msra.mxu0 0.0
    %1083 = vmatpush.msra.mxu0 0.0
    %1084 = vmatpush.msra.mxu0 0.0
    %1085 = vmatpush.msra.mxu0 0.0
    %1086 = vmatpush.msra.mxu0 0.0
    %1087 = vmatpush.msra.mxu0 0.0
    %1088 = vmatpush.msra.mxu0 0.0
    %1089 = vmatpush.msra.mxu0 0.0
    %1090 = vmatpush.msra.mxu0 0.0
    %1091 = vmatpush.msra.mxu0 0.0
    %1092 = vmatpush.msra.mxu0 0.0
    %1093 = vmatpush.msra.mxu0 0.0
    %1094 = vmatpush.msra.mxu0 %v1073
    %1095 = vmatpush.msra.mxu0 %v1072
    %1096 = vmatpush.msra.mxu0 %v1071
    %1097 = vmatpush.msra.mxu0 %v1070
    %1098 = vmatmul.f32.gmra.mxu0 %v1077
    %v1099 = vpop.f32.mrf.mxu0
    %v1100 = vadd.f32 %v1075, %v1099
    %1101 = vmatmul.f32.gmra.mxu0 %v1080
    %v1102 = vpop.f32.mrf.mxu0
    %v1103 = vadd.f32 %v1075, %v1102
    %1104 = vdwg.mxu0
    %v1105 = vadd.f32 %v702, %v1100
    %v1106 = vadd.f32 %v703, %v1103
    %v1107 = vld [vmem:[%s709 + $0x2] sm:$0x1]
    %v1108 = vld [vmem:[%s709 + $0x3] sm:$0x1]
    %v1109 = vsel %vm37, %v1105, 0.0
    %1110 = vadd.xlane.f32.xlu0 %v1109
    %v1111 = vpop.xlane.xlu0 %1110
    %v1112 = vsel %vm37, %v1106, 0.0
    %1113 = vadd.xlane.f32.xlu0 %v1112
    %v1114 = vpop.xlane.xlu0 %1113
    %v1115 = vmul.f32 %v1111, %v50
    %v1116 = vmul.f32 %v1114, %v50
    %v1117 = vsub.f32 %v1105, %v1115
    %v1118 = vsub.f32 %v1106, %v1116
    %v1119 = vmul.f32 %v1117, %v1117
    %v1120 = vmul.f32 %v1118, %v1118
    %v1121 = vsel %vm37, %v1119, 0.0
    %1122 = vadd.xlane.f32.xlu0 %v1121
    %v1123 = vpop.xlane.xlu0 %1122
    %v1124 = vsel %vm37, %v1120, 0.0
    %1125 = vadd.xlane.f32.xlu0 %v1124
    %v1126 = vpop.xlane.xlu0 %1125
    %v1127 = vmul.f32 %v1123, %v50
    %v1128 = vmul.f32 %v1126, %v50
    %v1129 = vadd.f32 %v1127, 1e-12
    %v1130 = vadd.f32 %v1128, 1e-12
    %v1131 = vrsqrt.pop %v1129
    %v1132 = vmul.f32 %v1131, %v1129
    %v1133 = vmul.f32 %v1132, %v1131
    %v1134 = vmul.f32 0.5, %v1133
    %v1135 = vsub.f32 1.5, %v1134
    %v1136 = vmul.f32 %v1131, %v1135
    %vm1137 = vweird.f32 %v1129
    %vm1138 = vweird.f32 %v1131
    %vm1139 = vmor %vm1137, %vm1138
    %v1140 = vsel %vm1139, %v1131, %v1136
    %v1141 = vrsqrt.pop %v1130
    %v1142 = vmul.f32 %v1141, %v1130
    %v1143 = vmul.f32 %v1142, %v1141
    %v1144 = vmul.f32 0.5, %v1143
    %v1145 = vsub.f32 1.5, %v1144
    %v1146 = vmul.f32 %v1141, %v1145
    %vm1147 = vweird.f32 %v1130
    %vm1148 = vweird.f32 %v1141
    %vm1149 = vmor %vm1147, %vm1148
    %v1150 = vsel %vm1149, %v1141, %v1146
    %v1151 = vmul.f32 %v1117, %v1140
    %v1152 = vmul.f32 %v1118, %v1150
    %v1153 = vperm.slane %v1107, 0
    %v1154 = vmul.f32 %v1151, %v1153
    %v1155 = vmul.f32 %v1152, %v1153
    %v1156 = vperm.slane %v1108, 0
    %v1157 = vadd.f32 %v1154, %v1156
    %v1158 = vadd.f32 %v1155, %v1156
    %s1159 = scalar_lea.vmem %s5, 32
    %v1160 = vld [vmem:[%s1159] sm:$0xff]
    %v1161 = vld [vmem:[%s1159 + $0x8] sm:$0xff]
    %v1162 = vld [vmem:[%s1159 + $0x10] sm:$0xff]
    %v1163 = vld [vmem:[%s1159 + $0x18] sm:$0xff]
    %v1164 = vld [vmem:[%s709 + $0x4] sm:$0x1]
    %v1165 = vperm.slane %v1164, 0
    %v1167 = vsel %vm37, %v1157, 0
    %v1170 = vsel %vm37, %v1158, 0
    %1172 = vmatpush.msra.mxu0 0.0
    %1173 = vmatpush.msra.mxu0 0.0
    %1174 = vmatpush.msra.mxu0 0.0
    %1175 = vmatpush.msra.mxu0 0.0
    %1176 = vmatpush.msra.mxu0 0.0
    %1177 = vmatpush.msra.mxu0 0.0
    %1178 = vmatpush.msra.mxu0 0.0
    %1179 = vmatpush.msra.mxu0 0.0
    %1180 = vmatpush.msra.mxu0 0.0
    %1181 = vmatpush.msra.mxu0 0.0
    %1182 = vmatpush.msra.mxu0 0.0
    %1183 = vmatpush.msra.mxu0 0.0
    %1184 = vmatpush.msra.mxu0 %v1163
    %1185 = vmatpush.msra.mxu0 %v1162
    %1186 = vmatpush.msra.mxu0 %v1161
    %1187 = vmatpush.msra.mxu0 %v1160
    %1188 = vmatmul.f32.gmra.mxu0 %v1167
    %v1189 = vpop.f32.mrf.mxu0
    %v1190 = vadd.f32 %v1165, %v1189
    %1191 = vmatmul.f32.gmra.mxu0 %v1170
    %v1192 = vpop.f32.mrf.mxu0
    %v1193 = vadd.f32 %v1165, %v1192
    %1194 = vdwg.mxu0
    %v1195 = vmul.f32 %v1190, 0.5
    %v1196 = vmul.f32 %v1193, 0.5
    %v1197 = vmul.f32 %v1190, 0.044715
    %v1198 = vmul.f32 %v1193, 0.044715
    %v1199 = vmul.f32 %v1197, %v1190
    %v1200 = vmul.f32 %v1198, %v1193
    %v1201 = vmul.f32 %v1199, %v1190
    %v1202 = vmul.f32 %v1200, %v1193
    %v1203 = vadd.f32 %v1190, %v1201
    %v1204 = vadd.f32 %v1193, %v1202
    %v1205 = vmul.f32 %v1203, 0.7978846
    %v1206 = vmul.f32 %v1204, 0.7978846
    %v1207 = vtanh.pop %v1205
    %v1208 = vtanh.pop %v1206
    %v1209 = vadd.f32 %v1207, 1.0
    %v1210 = vadd.f32 %v1208, 1.0
    %v1211 = vmul.f32 %v1195, %v1209
    %v1212 = vmul.f32 %v1196, %v1210
    %v1213 = vld [vmem:[%s1069 + $0x20] sm:$0xff]
    %v1214 = vld [vmem:[%s1069 + $0x28] sm:$0xff]
    %v1215 = vld [vmem:[%s1069 + $0x30] sm:$0xff]
    %v1216 = vld [vmem:[%s1069 + $0x38] sm:$0xff]
    %v1217 = vld [vmem:[%s1069 + $0x40] sm:$0xff]
    %v1218 = vld [vmem:[%s1069 + $0x48] sm:$0xff]
    %v1219 = vld [vmem:[%s1069 + $0x50] sm:$0xff]
    %v1220 = vld [vmem:[%s1069 + $0x58] sm:$0xff]
    %v1221 = vld [vmem:[%s709 + $0x5] sm:$0x1]
    %v1222 = vperm.slane %v1221, 0
    %v1224 = vsel %vm620, %v1211, 0
    %v1227 = vsel %vm620, %v1212, 0
    %1229 = vmatpush.msra.mxu0 0.0
    %1230 = vmatpush.msra.mxu0 0.0
    %1231 = vmatpush.msra.mxu0 0.0
    %1232 = vmatpush.msra.mxu0 0.0
    %1233 = vmatpush.msra.mxu0 0.0
    %1234 = vmatpush.msra.mxu0 0.0
    %1235 = vmatpush.msra.mxu0 0.0
    %1236 = vmatpush.msra.mxu0 0.0
    %1237 = vmatpush.msra.mxu0 %v1220
    %1238 = vmatpush.msra.mxu0 %v1219
    %1239 = vmatpush.msra.mxu0 %v1218
    %1240 = vmatpush.msra.mxu0 %v1217
    %1241 = vmatpush.msra.mxu0 %v1216
    %1242 = vmatpush.msra.mxu0 %v1215
    %1243 = vmatpush.msra.mxu0 %v1214
    %1244 = vmatpush.msra.mxu0 %v1213
    %1245 = vmatmul.f32.gmra.mxu0 %v1224
    %v1246 = vpop.f32.mrf.mxu0
    %v1247 = vadd.f32 %v1222, %v1246
    %1248 = vmatmul.f32.gmra.mxu0 %v1227
    %v1249 = vpop.f32.mrf.mxu0
    %v1250 = vadd.f32 %v1222, %v1249
    %1251 = vdwg.mxu0
    %v1252 = vadd.f32 %v1157, %v1247
    %v1253 = vadd.f32 %v1158, %v1250
    %v1254 = vld [vmem:[%s709 + $0x6] sm:$0x1]
    %v1255 = vld [vmem:[%s709 + $0x7] sm:$0x1]
    %v1256 = vsel %vm37, %v1252, 0.0
    %1257 = vadd.xlane.f32.xlu0 %v1256
    %v1258 = vpop.xlane.xlu0 %1257
    %v1259 = vsel %vm37, %v1253, 0.0
    %1260 = vadd.xlane.f32.xlu0 %v1259
    %v1261 = vpop.xlane.xlu0 %1260
    %v1262 = vmul.f32 %v1258, %v50
    %v1263 = vmul.f32 %v1261, %v50
    %v1264 = vsub.f32 %v1252, %v1262
    %v1265 = vsub.f32 %v1253, %v1263
    %v1266 = vmul.f32 %v1264, %v1264
    %v1267 = vmul.f32 %v1265, %v1265
    %v1268 = vsel %vm37, %v1266, 0.0
    %1269 = vadd.xlane.f32.xlu0 %v1268
    %v1270 = vpop.xlane.xlu0 %1269
    %v1271 = vsel %vm37, %v1267, 0.0
    %1272 = vadd.xlane.f32.xlu0 %v1271
    %v1273 = vpop.xlane.xlu0 %1272
    %v1274 = vmul.f32 %v1270, %v50
    %v1275 = vmul.f32 %v1273, %v50
    %v1276 = vadd.f32 %v1274, 1e-12
    %v1277 = vadd.f32 %v1275, 1e-12
    %v1278 = vrsqrt.pop %v1276
    %v1279 = vmul.f32 %v1278, %v1276
    %v1280 = vmul.f32 %v1279, %v1278
    %v1281 = vmul.f32 0.5, %v1280
    %v1282 = vsub.f32 1.5, %v1281
    %v1283 = vmul.f32 %v1278, %v1282
    %vm1284 = vweird.f32 %v1276
    %vm1285 = vweird.f32 %v1278
    %vm1286 = vmor %vm1284, %vm1285
    %v1287 = vsel %vm1286, %v1278, %v1283
    %v1288 = vrsqrt.pop %v1277
    %v1289 = vmul.f32 %v1288, %v1277
    %v1290 = vmul.f32 %v1289, %v1288
    %v1291 = vmul.f32 0.5, %v1290
    %v1292 = vsub.f32 1.5, %v1291
    %v1293 = vmul.f32 %v1288, %v1292
    %vm1294 = vweird.f32 %v1277
    %vm1295 = vweird.f32 %v1288
    %vm1296 = vmor %vm1294, %vm1295
    %v1297 = vsel %vm1296, %v1288, %v1293
    %v1298 = vmul.f32 %v1264, %v1287
    %v1299 = vmul.f32 %v1265, %v1297
    %v1300 = vperm.slane %v1254, 0
    %v1301 = vmul.f32 %v1298, %v1300
    %v1302 = vmul.f32 %v1299, %v1300
    %v1303 = vperm.slane %v1255, 0
    %v1304 = vadd.f32 %v1301, %v1303
    %v1305 = vadd.f32 %v1302, %v1303
    %v1307 = vrot.slane %v1305, 7
    %vm1309 = vcmask 1040384
    %v1310 = vsel %vm1309, %v1304, %v1307
    %v1311 = vld [vmem:[%s7] sm:$0xff]
    %v1312 = vld [vmem:[%s7 + $0x8] sm:$0xff]
    %v1313 = vld [vmem:[%s7 + $0x10] sm:$0xff]
    %v1314 = vld [vmem:[%s7 + $0x18] sm:$0xff]
    %v1315 = vld [vmem:[%s8] sm:$0x1]
    %v1317 = vperm.slane %v1315, 0
    %v1320 = vsel %vm37, %v1310, 0
    %1322 = vmatpush.msra.mxu0 0.0
    %1323 = vmatpush.msra.mxu0 0.0
    %1324 = vmatpush.msra.mxu0 0.0
    %1325 = vmatpush.msra.mxu0 0.0
    %1326 = vmatpush.msra.mxu0 0.0
    %1327 = vmatpush.msra.mxu0 0.0
    %1328 = vmatpush.msra.mxu0 0.0
    %1329 = vmatpush.msra.mxu0 0.0
    %1330 = vmatpush.msra.mxu0 0.0
    %1331 = vmatpush.msra.mxu0 0.0
    %1332 = vmatpush.msra.mxu0 0.0
    %1333 = vmatpush.msra.mxu0 0.0
    %1334 = vmatpush.msra.mxu0 %v1314
    %1335 = vmatpush.msra.mxu0 %v1313
    %1336 = vmatpush.msra.mxu0 %v1312
    %1337 = vmatpush.msra.mxu0 %v1311
    %1338 = vmatmul.f32.gmra.mxu0 %v1320
    %v1339 = vpop.f32.mrf.mxu0
    %v1340 = vadd.f32 %v1317, %v1339
    %1341 = vdwg.mxu0
    %vm1342 = vcmask 1041408
    %v1343 = vsel %vm1342, %v1340, -inf
    %1344 = vmax.xlane.f32.xlu0 %v1343
    %v1345 = vpop.xlane.xlu0 %1344
    %v1346 = vsub.f32 %v1340, %v1345
    %v1347 = vmul.f32 %v1346, 1.442695
    %v1348 = vpow.pop %v1347
    %v1349 = vsel %vm1342, %v1348, 0.0
    %1350 = vadd.xlane.f32.xlu0 %v1349
    %v1351 = vpop.xlane.xlu0 %1350
    %v1352 = vrcp.pop %v1351
    %v1353 = vmul.f32 %v1351, %v1352
    %v1354 = vsub.f32 1.0, %v1353
    %v1355 = vmul.f32 %v1352, %v1354
    %v1356 = vadd.f32 %v1352, %v1355
    %vm1357 = vweird.f32 %v1351
    %vm1358 = vweird.f32 %v1352
    %vm1359 = vmor %vm1357, %vm1358
    %v1360 = vsel %vm1359, %v1352, %v1356
    %v1361 = vand.u32 2147483647, %v1351
    %vm1362 = vcmp.eq.f32.partialorder %v1361, 8.507059e+37
    %v1363 = vand.u32 %v1351, 2147483648
    %v1364 = vor.u32 1.1754944e-38, %v1363
    %v1365 = vsel %vm1362, %v1364, %v1360
    %v1366 = vmul.f32 %v1348, %v1365
    %v1367 = vsel %vm1342, %v1366, 0.0
    %1368 = vst [vmem:[#allocation2] sm:$0xff] %v1367
    // Predicated region
    $region38: #{tpu_custom_call.1} parent=1 // pred_check
      _
    $region39: #{tpu_custom_call.1} parent=1 // pred_check_branch
      %1370 = sbr.rel (0) target = $region41
    $region40: #{tpu_custom_call.1} parent=1 // pred_region
      %1372 = vsyncadd [#allocation3], 0
      %s1374 = sshll.u32 [#allocation2], 4
      %s1375 = int_to_ptr.vmem [resolvable:$true] %s1374
      %s1376 = sshll.u32 %s9, 4
      %s1377 = int_to_ptr.hbm [resolvable:$true] %s1376
      %1379 = dma.vmem_to_hbm [thread:$0]  %s1375, 128, %s1377, [#allocation3]
    $region41: #{tpu_custom_call.1} parent=1 // pred_fallthru
      _
    // Predicated region
    $region42: #{tpu_custom_call.1} parent=1 // pred_check
      _
    $region43: #{tpu_custom_call.1} parent=1 // pred_check_branch
      %1381 = sbr.rel (0) target = $region45
    $region44: #{tpu_custom_call.1} parent=1 // pred_region
      %1383 = dma.done [#allocation3], 128
    $region45: #{tpu_custom_call.1} parent=1 // pred_fallthru
      _
    %1384 = vsyncpa [#allocation3], 1

</llo_original>
